<compile_context>
chip_gen: v6e
topology: v6e:2x2x1
jax: 0.10.0
libtpu: 0.0.40
codegen_flags: <defaults>
</compile_context>

<pallas_src>
import functools
import math

import jax
import jax.numpy as jnp
from jax.experimental import pallas as pl
from jax.experimental.pallas import tpu as pltpu

_PADL = 8  # left pad inside the dwconv scratch -> interior store is sublane-aligned


def _ffn_kernel(x_ref, w_in1_ref, w_in2_ref, b_in1_ref, b_in2_ref,
                w_dw1_ref, w_dw2_ref, b_dw1_ref, b_dw2_ref,
                w_out_ref, b_out_ref, o_ref, pad1_ref, pad2_ref,
                *, NB, H, W, C, hidden):
    """One grid step == NB batch elements (full H, W resident)."""
    M = NB * H * W
    WP = _PADL + W + 1

    # ---- project_in: 1x1 conv == two bf16 MXU matmuls (f32 accumulate) -----
    x = x_ref[...].reshape(M, C).astype(jnp.bfloat16)
    t1 = jnp.dot(x, w_in1_ref[...], preferred_element_type=jnp.float32) + b_in1_ref[...]
    t2 = jnp.dot(x, w_in2_ref[...], preferred_element_type=jnp.float32) + b_in2_ref[...]

    # ---- depthwise 3x3 conv (padding=1), one independent branch at a time --
    def dwconv(t, pad_ref, w_dw_ref, b_dw_ref):
        # Zero only the thin border that the shifted reads touch.  Done every
        # step (not pl.when(pid == 0)) so it is correct even when the
        # "parallel" batch axis is split across TensorCores; the interior is
        # fully rewritten below so the border stays valid across steps.
        zrow = jnp.zeros((NB, 1, WP, hidden), jnp.float32)
        pad_ref[:, 0:1, :, :] = zrow
        pad_ref[:, H + 1:H + 2, :, :] = zrow
        zcol = jnp.zeros((NB, H + 2, 1, hidden), jnp.float32)
        pad_ref[:, :, _PADL - 1:_PADL, :] = zcol
        pad_ref[:, :, _PADL + W:_PADL + W + 1, :] = zcol

        # Aligned interior store (sublane offset _PADL is a multiple of 8).
        pad_ref[:, 1:H + 1, _PADL:_PADL + W, :] = t.reshape(NB, H, W, hidden)

        acc = jnp.broadcast_to(b_dw_ref[...].reshape(1, 1, 1, hidden),
                               (NB, H, W, hidden))
        for dx in range(3):
            # one shifted read per horizontal tap position (3 total, not 9)
            col = pad_ref[:, :, _PADL - 1 + dx:_PADL - 1 + dx + W, :]  # (NB,H+2,W,h)
            for dy in range(3):
                k = dy * 3 + dx
                tap = w_dw_ref[k:k + 1, :].reshape(1, 1, 1, hidden)
                # vertical shift = cheap leading-dim value slice
                acc = acc + col[:, dy:dy + H] * tap
        return acc.reshape(M, hidden)

    d1 = dwconv(t1, pad1_ref, w_dw1_ref, b_dw1_ref)
    d2 = dwconv(t2, pad2_ref, w_dw2_ref, b_dw2_ref)

    # ---- gated GELU (exact erf, matching F.gelu default) -------------------
    g = 0.5 * d1 * (1.0 + jax.lax.erf(d1 * (1.0 / math.sqrt(2.0))))
    y = g * d2                                                    # (M, hidden) f32

    # ---- project_out: 1x1 conv == bf16 MXU matmul --------------------------
    out = jnp.dot(y.astype(jnp.bfloat16), w_out_ref[...],
                  preferred_element_type=jnp.float32) + b_out_ref[...]
    o_ref[...] = out.reshape(NB, H, W, C).astype(o_ref.dtype)


def _pick_batch_block(N, H, W, hidden, vmem_budget_bytes=8 << 20):
    """Largest divisor of N whose per-step working set fits a VMEM budget."""
    per_image = (2 * (H + 2) * (_PADL + W + 8) * hidden * 4   # two padded scratches
                 + 8 * H * W * hidden * 4)                    # live f32 intermediates
    nb = max(1, min(N, vmem_budget_bytes // max(per_image, 1)))
    while N % nb:
        nb -= 1
    return nb


@jax.jit
def feedforward_pallas(x_nchw, params):
    """x_nchw: (N, C, H, W) float32.  Returns (N, C, H, W) float32."""
    w_in, b_in, w_dw, b_dw, w_out, b_out = params
    N, C, H, W = x_nchw.shape
    hidden = w_out.shape[0]

    # NCHW -> NHWC so channels ride the lane dimension.  (In an all-NHWC model
    # these two transposes disappear from the hot path entirely.)
    x_nhwc = jnp.transpose(x_nchw, (0, 2, 3, 1))

    # Pre-split gate/value halves (kernel never slices channels) and cast the
    # MXU operands to bf16; biases / dwconv taps stay f32.
    w_in1 = w_in[:, :hidden].astype(jnp.bfloat16)
    w_in2 = w_in[:, hidden:].astype(jnp.bfloat16)
    b_in1, b_in2 = b_in[:, :hidden], b_in[:, hidden:]
    w_dw1, w_dw2 = w_dw[:, :hidden], w_dw[:, hidden:]
    b_dw1, b_dw2 = b_dw[:, :hidden], b_dw[:, hidden:]
    w_out_bf16 = w_out.astype(jnp.bfloat16)

    NB = _pick_batch_block(N, H, W, hidden)
    WP = _PADL + W + 1

    kernel = functools.partial(_ffn_kernel, NB=NB, H=H, W=W, C=C, hidden=hidden)

    def wspec(shape):
        return pl.BlockSpec(shape, lambda n: (0, 0))

    out_nhwc = pl.pallas_call(
        kernel,
        out_shape=jax.ShapeDtypeStruct((N, H, W, C), x_nhwc.dtype),
        grid_spec=pltpu.PrefetchScalarGridSpec(
            num_scalar_prefetch=0,
            grid=(N // NB,),
            in_specs=[
                pl.BlockSpec((NB, H, W, C), lambda n: (n, 0, 0, 0)),
                wspec((C, hidden)), wspec((C, hidden)),      # w_in1, w_in2 (bf16)
                wspec((1, hidden)), wspec((1, hidden)),      # b_in1, b_in2
                wspec((9, hidden)), wspec((9, hidden)),      # w_dw1, w_dw2
                wspec((1, hidden)), wspec((1, hidden)),      # b_dw1, b_dw2
                wspec((hidden, C)), wspec((1, C)),           # w_out (bf16), b_out
            ],
            out_specs=pl.BlockSpec((NB, H, W, C), lambda n: (n, 0, 0, 0)),
            scratch_shapes=[
                pltpu.VMEM((NB, H + 2, WP, hidden), jnp.float32),
                pltpu.VMEM((NB, H + 2, WP, hidden), jnp.float32),
            ],
        ),
        compiler_params=pltpu.CompilerParams(
            dimension_semantics=("parallel",)),
    )(x_nhwc, w_in1, w_in2, b_in1, b_in2,
      w_dw1, w_dw2, b_dw1, b_dw2, w_out_bf16, b_out)

    return jnp.transpose(out_nhwc, (0, 3, 1, 2))  # back to NCHW


def feedforward_ref(x_nchw, params):
    """Pure-JAX f32 reference (same math, plain XLA ops) for verification."""
    w_in, b_in, w_dw, b_dw, w_out, b_out = params
    hidden = w_out.shape[0]
    x = jnp.transpose(x_nchw, (0, 2, 3, 1))                     # NHWC
    t = jnp.einsum('nhwc,cd->nhwd', x, w_in) + b_in[0]
    N, H, W, C2 = t.shape
    tp = jnp.pad(t, ((0, 0), (1, 1), (1, 1), (0, 0)))
    acc = jnp.broadcast_to(b_dw[0], (N, H, W, C2))
    for dy in range(3):
        for dx in range(3):
            acc = acc + tp[:, dy:dy + H, dx:dx + W, :] * w_dw[dy * 3 + dx]
    x1, x2 = acc[..., :hidden], acc[..., hidden:]
    g = 0.5 * x1 * (1.0 + jax.lax.erf(x1 / jnp.sqrt(2.0)))
    y = g * x2
    out = jnp.einsum('nhwk,kc->nhwc', y, w_out) + b_out[0]
    return jnp.transpose(out, (0, 3, 1, 2))


def init_params(key, dim, ffn_expansion_factor):
    """Deterministic synthetic weights, stored in kernel layout.

    PyTorch shapes -> kernel layout:
      project_in.weight  (2h, dim, 1, 1) -> w_in  (dim, 2h)
      project_in.bias    (2h,)           -> b_in  (1, 2h)
      dwconv.weight      (2h, 1, 3, 3)   -> w_dw  (9, 2h)   [tap-major]
      dwconv.bias        (2h,)           -> b_dw  (1, 2h)
      project_out.weight (dim, h, 1, 1)  -> w_out (h, dim)
      project_out.bias   (dim,)          -> b_out (1, dim)
    """
    hidden = int(dim * ffn_expansion_factor)
    c2 = 2 * hidden
    ks = jax.random.split(key, 6)
    w_in = 0.05 * jax.random.normal(ks[0], (dim, c2), jnp.float32)
    b_in = 0.05 * jax.random.normal(ks[1], (1, c2), jnp.float32)
    w_dw = 0.05 * jax.random.normal(ks[2], (9, c2), jnp.float32)
    b_dw = 0.05 * jax.random.normal(ks[3], (1, c2), jnp.float32)
    w_out = 0.05 * jax.random.normal(ks[4], (hidden, dim), jnp.float32)
    b_out = 0.05 * jax.random.normal(ks[5], (1, dim), jnp.float32)
    return (w_in, b_in, w_dw, b_dw, w_out, b_out)


if __name__ == "__main__":
    # Module config: FeedForward(dim=64, ffn_expansion_factor=2.0, bias=True)
    N, dim, H, W = 2, 64, 8, 8
    ffn_expansion_factor = 2.0

    key = jax.random.PRNGKey(0)
    kx, kp = jax.random.split(key)
    x = jax.random.normal(kx, (N, dim, H, W), jnp.float32)   # NCHW, like PyTorch
    params = init_params(kp, dim, ffn_expansion_factor)

    out = jax.block_until_ready(feedforward_pallas(x, params))
    ref = jax.block_until_ready(feedforward_ref(x, params))

    assert out.shape == (N, dim, H, W)
    # Tolerance widened vs. a pure-f32 kernel because MXU operands are bf16
    # (accumulation is f32); elementwise math (dwconv/GELU/gate) is f32.
    assert jnp.allclose(out, ref, rtol=2e-2, atol=2e-2), \
        f"max abs err {jnp.max(jnp.abs(out - ref))}"

    print("KERNEL_OK")
</pallas_src>

<mosaic_0001>
module attributes {stable_mosaic.version = 11 : i64} {
  func.func @_ffn_kernel(%arg0: i32, %arg1: memref<2x8x8x64xf32, #tpu.memory_space<vmem>>, %arg2: memref<64x128xbf16, #tpu.memory_space<vmem>>, %arg3: memref<64x128xbf16, #tpu.memory_space<vmem>>, %arg4: memref<1x128xf32, #tpu.memory_space<vmem>>, %arg5: memref<1x128xf32, #tpu.memory_space<vmem>>, %arg6: memref<9x128xf32, #tpu.memory_space<vmem>>, %arg7: memref<9x128xf32, #tpu.memory_space<vmem>>, %arg8: memref<1x128xf32, #tpu.memory_space<vmem>>, %arg9: memref<1x128xf32, #tpu.memory_space<vmem>>, %arg10: memref<128x64xbf16, #tpu.memory_space<vmem>>, %arg11: memref<1x64xf32, #tpu.memory_space<vmem>>, %arg12: memref<2x8x8x64xf32, #tpu.memory_space<vmem>>, %arg13: memref<2x10x17x128xf32, #tpu.memory_space<vmem>>, %arg14: memref<2x10x17x128xf32, #tpu.memory_space<vmem>>) attributes {dimension_semantics = [#tpu.dimension_semantics<parallel>], iteration_bounds = array<i64: 1>, scalar_prefetch = 0 : i64, scratch_operands = 2 : i64, tpu.core_type = #tpu.core_type<tc>, window_params = [{transform_indices = @transform_0, window_bounds = array<i64: 2, 8, 8, 64>}, {pipeline_mode = #tpu.pipeline_mode<synchronous>, transform_indices = @transform_1, window_bounds = array<i64: 64, 128>}, {pipeline_mode = #tpu.pipeline_mode<synchronous>, transform_indices = @transform_2, window_bounds = array<i64: 64, 128>}, {pipeline_mode = #tpu.pipeline_mode<synchronous>, transform_indices = @transform_3, window_bounds = array<i64: 1, 128>}, {pipeline_mode = #tpu.pipeline_mode<synchronous>, transform_indices = @transform_4, window_bounds = array<i64: 1, 128>}, {pipeline_mode = #tpu.pipeline_mode<synchronous>, transform_indices = @transform_5, window_bounds = array<i64: 9, 128>}, {pipeline_mode = #tpu.pipeline_mode<synchronous>, transform_indices = @transform_6, window_bounds = array<i64: 9, 128>}, {pipeline_mode = #tpu.pipeline_mode<synchronous>, transform_indices = @transform_7, window_bounds = array<i64: 1, 128>}, {pipeline_mode = #tpu.pipeline_mode<synchronous>, transform_indices = @transform_8, window_bounds = array<i64: 1, 128>}, {pipeline_mode = #tpu.pipeline_mode<synchronous>, transform_indices = @transform_9, window_bounds = array<i64: 128, 64>}, {pipeline_mode = #tpu.pipeline_mode<synchronous>, transform_indices = @transform_10, window_bounds = array<i64: 1, 64>}, {transform_indices = @transform_11, window_bounds = array<i64: 2, 8, 8, 64>}]} {
    %c0 = arith.constant 0 : index
    %c0_0 = arith.constant 0 : index
    %c0_1 = arith.constant 0 : index
    %c0_2 = arith.constant 0 : index
    %0 = vector.load %arg1[%c0, %c0_0, %c0_1, %c0_2] : memref<2x8x8x64xf32, #tpu.memory_space<vmem>>, vector<2x8x8x64xf32>
    %1 = vector.shape_cast %0 : vector<2x8x8x64xf32> to vector<128x64xf32>
    %2 = arith.truncf %1 : vector<128x64xf32> to vector<128x64xbf16>
    %c0_3 = arith.constant 0 : index
    %c0_4 = arith.constant 0 : index
    %3 = vector.load %arg2[%c0_3, %c0_4] : memref<64x128xbf16, #tpu.memory_space<vmem>>, vector<64x128xbf16>
    %cst = arith.constant dense<0.000000e+00> : vector<128x128xf32>
    %4 = tpu.matmul %2, %3, %cst {dimension_numbers = #tpu.dot_dimension_numbers<[1], [0], [0], [1], [0, 0, 1, 1], [], []>} : vector<128x64xbf16>, vector<64x128xbf16>, vector<128x128xf32> -> vector<128x128xf32>
    %c0_5 = arith.constant 0 : index
    %c0_6 = arith.constant 0 : index
    %5 = vector.load %arg4[%c0_5, %c0_6] : memref<1x128xf32, #tpu.memory_space<vmem>>, vector<1x128xf32>
    %6 = vector.broadcast %5 : vector<1x128xf32> to vector<128x128xf32>
    %7 = arith.addf %4, %6 : vector<128x128xf32>
    %c0_7 = arith.constant 0 : index
    %c0_8 = arith.constant 0 : index
    %8 = vector.load %arg3[%c0_7, %c0_8] : memref<64x128xbf16, #tpu.memory_space<vmem>>, vector<64x128xbf16>
    %cst_9 = arith.constant dense<0.000000e+00> : vector<128x128xf32>
    %9 = tpu.matmul %2, %8, %cst_9 {dimension_numbers = #tpu.dot_dimension_numbers<[1], [0], [0], [1], [0, 0, 1, 1], [], []>} : vector<128x64xbf16>, vector<64x128xbf16>, vector<128x128xf32> -> vector<128x128xf32>
    %c0_10 = arith.constant 0 : index
    %c0_11 = arith.constant 0 : index
    %10 = vector.load %arg5[%c0_10, %c0_11] : memref<1x128xf32, #tpu.memory_space<vmem>>, vector<1x128xf32>
    %11 = vector.broadcast %10 : vector<1x128xf32> to vector<128x128xf32>
    %12 = arith.addf %9, %11 : vector<128x128xf32>
    %cst_12 = arith.constant 0.000000e+00 : f32
    %13 = vector.broadcast %cst_12 : f32 to vector<2x1x17x128xf32>
    %c0_13 = arith.constant 0 : index
    %c0_14 = arith.constant 0 : index
    %c0_15 = arith.constant 0 : index
    %c0_16 = arith.constant 0 : index
    %14 = vector.load %arg13[%c0_13, %c0_14, %c0_15, %c0_16] : memref<2x10x17x128xf32, #tpu.memory_space<vmem>>, vector<2x1x17x128xf32>
    tpu.vector_store %arg13[%c0_13, %c0_14, %c0_15, %c0_16], %13 {strides = array<i32>} : memref<2x10x17x128xf32, #tpu.memory_space<vmem>>, vector<2x1x17x128xf32>,
    %c0_17 = arith.constant 0 : index
    %c9 = arith.constant 9 : index
    %c0_18 = arith.constant 0 : index
    %c0_19 = arith.constant 0 : index
    %15 = vector.load %arg13[%c0_17, %c9, %c0_18, %c0_19] : memref<2x10x17x128xf32, #tpu.memory_space<vmem>>, vector<2x1x17x128xf32>
    tpu.vector_store %arg13[%c0_17, %c9, %c0_18, %c0_19], %13 {strides = array<i32>} : memref<2x10x17x128xf32, #tpu.memory_space<vmem>>, vector<2x1x17x128xf32>,
    %cst_20 = arith.constant 0.000000e+00 : f32
    %16 = vector.broadcast %cst_20 : f32 to vector<2x10x1x128xf32>
    %c0_21 = arith.constant 0 : index
    %c0_22 = arith.constant 0 : index
    %c7 = arith.constant 7 : index
    %c0_23 = arith.constant 0 : index
    %17 = vector.load %arg13[%c0_21, %c0_22, %c7, %c0_23] : memref<2x10x17x128xf32, #tpu.memory_space<vmem>>, vector<2x10x1x128xf32>
    tpu.vector_store %arg13[%c0_21, %c0_22, %c7, %c0_23], %16 {strides = array<i32>} : memref<2x10x17x128xf32, #tpu.memory_space<vmem>>, vector<2x10x1x128xf32>,
    %c0_24 = arith.constant 0 : index
    %c0_25 = arith.constant 0 : index
    %c16 = arith.constant 16 : index
    %c0_26 = arith.constant 0 : index
    %18 = vector.load %arg13[%c0_24, %c0_25, %c16, %c0_26] : memref<2x10x17x128xf32, #tpu.memory_space<vmem>>, vector<2x10x1x128xf32>
    tpu.vector_store %arg13[%c0_24, %c0_25, %c16, %c0_26], %16 {strides = array<i32>} : memref<2x10x17x128xf32, #tpu.memory_space<vmem>>, vector<2x10x1x128xf32>,
    %19 = vector.shape_cast %7 : vector<128x128xf32> to vector<2x8x8x128xf32>
    %c0_27 = arith.constant 0 : index
    %c1 = arith.constant 1 : index
    %c8 = arith.constant 8 : index
    %c0_28 = arith.constant 0 : index
    %20 = vector.load %arg13[%c0_27, %c1, %c8, %c0_28] : memref<2x10x17x128xf32, #tpu.memory_space<vmem>>, vector<2x8x8x128xf32>
    tpu.vector_store %arg13[%c0_27, %c1, %c8, %c0_28], %19 {strides = array<i32>} : memref<2x10x17x128xf32, #tpu.memory_space<vmem>>, vector<2x8x8x128xf32>,
    %c0_29 = arith.constant 0 : index
    %c0_30 = arith.constant 0 : index
    %21 = vector.load %arg8[%c0_29, %c0_30] : memref<1x128xf32, #tpu.memory_space<vmem>>, vector<1x128xf32>
    %22 = vector.shape_cast %21 : vector<1x128xf32> to vector<1x1x1x128xf32>
    %23 = vector.shape_cast %22 : vector<1x1x1x128xf32> to vector<1x1x1x128xf32>
    %24 = vector.broadcast %23 : vector<1x1x1x128xf32> to vector<2x8x8x128xf32>
    %c0_31 = arith.constant 0 : index
    %c0_32 = arith.constant 0 : index
    %c7_33 = arith.constant 7 : index
    %c0_34 = arith.constant 0 : index
    %25 = vector.load %arg13[%c0_31, %c0_32, %c7_33, %c0_34] : memref<2x10x17x128xf32, #tpu.memory_space<vmem>>, vector<2x10x8x128xf32>
    %c0_35 = arith.constant 0 : index
    %c0_36 = arith.constant 0 : index
    %26 = vector.load %arg6[%c0_35, %c0_36] : memref<9x128xf32, #tpu.memory_space<vmem>>, vector<1x128xf32>
    %27 = vector.shape_cast %26 : vector<1x128xf32> to vector<1x1x1x128xf32>
    %28 = vector.extract_strided_slice %25 {offsets = [0, 0, 0, 0], sizes = [2, 8, 8, 128], strides = [1, 1, 1, 1]} : vector<2x10x8x128xf32> to vector<2x8x8x128xf32>
    %29 = vector.broadcast %27 : vector<1x1x1x128xf32> to vector<2x8x8x128xf32>
    %30 = arith.mulf %28, %29 : vector<2x8x8x128xf32>
    %31 = arith.addf %24, %30 : vector<2x8x8x128xf32>
    %c3 = arith.constant 3 : index
    %c0_37 = arith.constant 0 : index
    %32 = vector.load %arg6[%c3, %c0_37] : memref<9x128xf32, #tpu.memory_space<vmem>>, vector<1x128xf32>
    %33 = vector.shape_cast %32 : vector<1x128xf32> to vector<1x1x1x128xf32>
    %34 = vector.extract_strided_slice %25 {offsets = [0, 1, 0, 0], sizes = [2, 8, 8, 128], strides = [1, 1, 1, 1]} : vector<2x10x8x128xf32> to vector<2x8x8x128xf32>
    %35 = vector.broadcast %33 : vector<1x1x1x128xf32> to vector<2x8x8x128xf32>
    %36 = arith.mulf %34, %35 : vector<2x8x8x128xf32>
    %37 = arith.addf %31, %36 : vector<2x8x8x128xf32>
    %c6 = arith.constant 6 : index
    %c0_38 = arith.constant 0 : index
    %38 = vector.load %arg6[%c6, %c0_38] : memref<9x128xf32, #tpu.memory_space<vmem>>, vector<1x128xf32>
    %39 = vector.shape_cast %38 : vector<1x128xf32> to vector<1x1x1x128xf32>
    %40 = vector.extract_strided_slice %25 {offsets = [0, 2, 0, 0], sizes = [2, 8, 8, 128], strides = [1, 1, 1, 1]} : vector<2x10x8x128xf32> to vector<2x8x8x128xf32>
    %41 = vector.broadcast %39 : vector<1x1x1x128xf32> to vector<2x8x8x128xf32>
    %42 = arith.mulf %40, %41 : vector<2x8x8x128xf32>
    %43 = arith.addf %37, %42 : vector<2x8x8x128xf32>
    %c0_39 = arith.constant 0 : index
    %c0_40 = arith.constant 0 : index
    %c8_41 = arith.constant 8 : index
    %c0_42 = arith.constant 0 : index
    %44 = vector.load %arg13[%c0_39, %c0_40, %c8_41, %c0_42] : memref<2x10x17x128xf32, #tpu.memory_space<vmem>>, vector<2x10x8x128xf32>
    %c1_43 = arith.constant 1 : index
    %c0_44 = arith.constant 0 : index
    %45 = vector.load %arg6[%c1_43, %c0_44] : memref<9x128xf32, #tpu.memory_space<vmem>>, vector<1x128xf32>
    %46 = vector.shape_cast %45 : vector<1x128xf32> to vector<1x1x1x128xf32>
    %47 = vector.extract_strided_slice %44 {offsets = [0, 0, 0, 0], sizes = [2, 8, 8, 128], strides = [1, 1, 1, 1]} : vector<2x10x8x128xf32> to vector<2x8x8x128xf32>
    %48 = vector.broadcast %46 : vector<1x1x1x128xf32> to vector<2x8x8x128xf32>
    %49 = arith.mulf %47, %48 : vector<2x8x8x128xf32>
    %50 = arith.addf %43, %49 : vector<2x8x8x128xf32>
    %c4 = arith.constant 4 : index
    %c0_45 = arith.constant 0 : index
    %51 = vector.load %arg6[%c4, %c0_45] : memref<9x128xf32, #tpu.memory_space<vmem>>, vector<1x128xf32>
    %52 = vector.shape_cast %51 : vector<1x128xf32> to vector<1x1x1x128xf32>
    %53 = vector.extract_strided_slice %44 {offsets = [0, 1, 0, 0], sizes = [2, 8, 8, 128], strides = [1, 1, 1, 1]} : vector<2x10x8x128xf32> to vector<2x8x8x128xf32>
    %54 = vector.broadcast %52 : vector<1x1x1x128xf32> to vector<2x8x8x128xf32>
    %55 = arith.mulf %53, %54 : vector<2x8x8x128xf32>
    %56 = arith.addf %50, %55 : vector<2x8x8x128xf32>
    %c7_46 = arith.constant 7 : index
    %c0_47 = arith.constant 0 : index
    %57 = vector.load %arg6[%c7_46, %c0_47] : memref<9x128xf32, #tpu.memory_space<vmem>>, vector<1x128xf32>
    %58 = vector.shape_cast %57 : vector<1x128xf32> to vector<1x1x1x128xf32>
    %59 = vector.extract_strided_slice %44 {offsets = [0, 2, 0, 0], sizes = [2, 8, 8, 128], strides = [1, 1, 1, 1]} : vector<2x10x8x128xf32> to vector<2x8x8x128xf32>
    %60 = vector.broadcast %58 : vector<1x1x1x128xf32> to vector<2x8x8x128xf32>
    %61 = arith.mulf %59, %60 : vector<2x8x8x128xf32>
    %62 = arith.addf %56, %61 : vector<2x8x8x128xf32>
    %c0_48 = arith.constant 0 : index
    %c0_49 = arith.constant 0 : index
    %c9_50 = arith.constant 9 : index
    %c0_51 = arith.constant 0 : index
    %63 = vector.load %arg13[%c0_48, %c0_49, %c9_50, %c0_51] : memref<2x10x17x128xf32, #tpu.memory_space<vmem>>, vector<2x10x8x128xf32>
    %c2 = arith.constant 2 : index
    %c0_52 = arith.constant 0 : index
    %64 = vector.load %arg6[%c2, %c0_52] : memref<9x128xf32, #tpu.memory_space<vmem>>, vector<1x128xf32>
    %65 = vector.shape_cast %64 : vector<1x128xf32> to vector<1x1x1x128xf32>
    %66 = vector.extract_strided_slice %63 {offsets = [0, 0, 0, 0], sizes = [2, 8, 8, 128], strides = [1, 1, 1, 1]} : vector<2x10x8x128xf32> to vector<2x8x8x128xf32>
    %67 = vector.broadcast %65 : vector<1x1x1x128xf32> to vector<2x8x8x128xf32>
    %68 = arith.mulf %66, %67 : vector<2x8x8x128xf32>
    %69 = arith.addf %62, %68 : vector<2x8x8x128xf32>
    %c5 = arith.constant 5 : index
    %c0_53 = arith.constant 0 : index
    %70 = vector.load %arg6[%c5, %c0_53] : memref<9x128xf32, #tpu.memory_space<vmem>>, vector<1x128xf32>
    %71 = vector.shape_cast %70 : vector<1x128xf32> to vector<1x1x1x128xf32>
    %72 = vector.extract_strided_slice %63 {offsets = [0, 1, 0, 0], sizes = [2, 8, 8, 128], strides = [1, 1, 1, 1]} : vector<2x10x8x128xf32> to vector<2x8x8x128xf32>
    %73 = vector.broadcast %71 : vector<1x1x1x128xf32> to vector<2x8x8x128xf32>
    %74 = arith.mulf %72, %73 : vector<2x8x8x128xf32>
    %75 = arith.addf %69, %74 : vector<2x8x8x128xf32>
    %c8_54 = arith.constant 8 : index
    %c0_55 = arith.constant 0 : index
    %76 = vector.load %arg6[%c8_54, %c0_55] : memref<9x128xf32, #tpu.memory_space<vmem>>, vector<1x128xf32>
    %77 = vector.shape_cast %76 : vector<1x128xf32> to vector<1x1x1x128xf32>
    %78 = vector.extract_strided_slice %63 {offsets = [0, 2, 0, 0], sizes = [2, 8, 8, 128], strides = [1, 1, 1, 1]} : vector<2x10x8x128xf32> to vector<2x8x8x128xf32>
    %79 = vector.broadcast %77 : vector<1x1x1x128xf32> to vector<2x8x8x128xf32>
    %80 = arith.mulf %78, %79 : vector<2x8x8x128xf32>
    %81 = arith.addf %75, %80 : vector<2x8x8x128xf32>
    %82 = vector.shape_cast %81 : vector<2x8x8x128xf32> to vector<128x128xf32>
    %cst_56 = arith.constant 0.000000e+00 : f32
    %83 = vector.broadcast %cst_56 : f32 to vector<2x1x17x128xf32>
    %c0_57 = arith.constant 0 : index
    %c0_58 = arith.constant 0 : index
    %c0_59 = arith.constant 0 : index
    %c0_60 = arith.constant 0 : index
    %84 = vector.load %arg14[%c0_57, %c0_58, %c0_59, %c0_60] : memref<2x10x17x128xf32, #tpu.memory_space<vmem>>, vector<2x1x17x128xf32>
    tpu.vector_store %arg14[%c0_57, %c0_58, %c0_59, %c0_60], %83 {strides = array<i32>} : memref<2x10x17x128xf32, #tpu.memory_space<vmem>>, vector<2x1x17x128xf32>,
    %c0_61 = arith.constant 0 : index
    %c9_62 = arith.constant 9 : index
    %c0_63 = arith.constant 0 : index
    %c0_64 = arith.constant 0 : index
    %85 = vector.load %arg14[%c0_61, %c9_62, %c0_63, %c0_64] : memref<2x10x17x128xf32, #tpu.memory_space<vmem>>, vector<2x1x17x128xf32>
    tpu.vector_store %arg14[%c0_61, %c9_62, %c0_63, %c0_64], %83 {strides = array<i32>} : memref<2x10x17x128xf32, #tpu.memory_space<vmem>>, vector<2x1x17x128xf32>,
    %cst_65 = arith.constant 0.000000e+00 : f32
    %86 = vector.broadcast %cst_65 : f32 to vector<2x10x1x128xf32>
    %c0_66 = arith.constant 0 : index
    %c0_67 = arith.constant 0 : index
    %c7_68 = arith.constant 7 : index
    %c0_69 = arith.constant 0 : index
    %87 = vector.load %arg14[%c0_66, %c0_67, %c7_68, %c0_69] : memref<2x10x17x128xf32, #tpu.memory_space<vmem>>, vector<2x10x1x128xf32>
    tpu.vector_store %arg14[%c0_66, %c0_67, %c7_68, %c0_69], %86 {strides = array<i32>} : memref<2x10x17x128xf32, #tpu.memory_space<vmem>>, vector<2x10x1x128xf32>,
    %c0_70 = arith.constant 0 : index
    %c0_71 = arith.constant 0 : index
    %c16_72 = arith.constant 16 : index
    %c0_73 = arith.constant 0 : index
    %88 = vector.load %arg14[%c0_70, %c0_71, %c16_72, %c0_73] : memref<2x10x17x128xf32, #tpu.memory_space<vmem>>, vector<2x10x1x128xf32>
    tpu.vector_store %arg14[%c0_70, %c0_71, %c16_72, %c0_73], %86 {strides = array<i32>} : memref<2x10x17x128xf32, #tpu.memory_space<vmem>>, vector<2x10x1x128xf32>,
    %89 = vector.shape_cast %12 : vector<128x128xf32> to vector<2x8x8x128xf32>
    %c0_74 = arith.constant 0 : index
    %c1_75 = arith.constant 1 : index
    %c8_76 = arith.constant 8 : index
    %c0_77 = arith.constant 0 : index
    %90 = vector.load %arg14[%c0_74, %c1_75, %c8_76, %c0_77] : memref<2x10x17x128xf32, #tpu.memory_space<vmem>>, vector<2x8x8x128xf32>
    tpu.vector_store %arg14[%c0_74, %c1_75, %c8_76, %c0_77], %89 {strides = array<i32>} : memref<2x10x17x128xf32, #tpu.memory_space<vmem>>, vector<2x8x8x128xf32>,
    %c0_78 = arith.constant 0 : index
    %c0_79 = arith.constant 0 : index
    %91 = vector.load %arg9[%c0_78, %c0_79] : memref<1x128xf32, #tpu.memory_space<vmem>>, vector<1x128xf32>
    %92 = vector.shape_cast %91 : vector<1x128xf32> to vector<1x1x1x128xf32>
    %93 = vector.shape_cast %92 : vector<1x1x1x128xf32> to vector<1x1x1x128xf32>
    %94 = vector.broadcast %93 : vector<1x1x1x128xf32> to vector<2x8x8x128xf32>
    %c0_80 = arith.constant 0 : index
    %c0_81 = arith.constant 0 : index
    %c7_82 = arith.constant 7 : index
    %c0_83 = arith.constant 0 : index
    %95 = vector.load %arg14[%c0_80, %c0_81, %c7_82, %c0_83] : memref<2x10x17x128xf32, #tpu.memory_space<vmem>>, vector<2x10x8x128xf32>
    %c0_84 = arith.constant 0 : index
    %c0_85 = arith.constant 0 : index
    %96 = vector.load %arg7[%c0_84, %c0_85] : memref<9x128xf32, #tpu.memory_space<vmem>>, vector<1x128xf32>
    %97 = vector.shape_cast %96 : vector<1x128xf32> to vector<1x1x1x128xf32>
    %98 = vector.extract_strided_slice %95 {offsets = [0, 0, 0, 0], sizes = [2, 8, 8, 128], strides = [1, 1, 1, 1]} : vector<2x10x8x128xf32> to vector<2x8x8x128xf32>
    %99 = vector.broadcast %97 : vector<1x1x1x128xf32> to vector<2x8x8x128xf32>
    %100 = arith.mulf %98, %99 : vector<2x8x8x128xf32>
    %101 = arith.addf %94, %100 : vector<2x8x8x128xf32>
    %c3_86 = arith.constant 3 : index
    %c0_87 = arith.constant 0 : index
    %102 = vector.load %arg7[%c3_86, %c0_87] : memref<9x128xf32, #tpu.memory_space<vmem>>, vector<1x128xf32>
    %103 = vector.shape_cast %102 : vector<1x128xf32> to vector<1x1x1x128xf32>
    %104 = vector.extract_strided_slice %95 {offsets = [0, 1, 0, 0], sizes = [2, 8, 8, 128], strides = [1, 1, 1, 1]} : vector<2x10x8x128xf32> to vector<2x8x8x128xf32>
    %105 = vector.broadcast %103 : vector<1x1x1x128xf32> to vector<2x8x8x128xf32>
    %106 = arith.mulf %104, %105 : vector<2x8x8x128xf32>
    %107 = arith.addf %101, %106 : vector<2x8x8x128xf32>
    %c6_88 = arith.constant 6 : index
    %c0_89 = arith.constant 0 : index
    %108 = vector.load %arg7[%c6_88, %c0_89] : memref<9x128xf32, #tpu.memory_space<vmem>>, vector<1x128xf32>
    %109 = vector.shape_cast %108 : vector<1x128xf32> to vector<1x1x1x128xf32>
    %110 = vector.extract_strided_slice %95 {offsets = [0, 2, 0, 0], sizes = [2, 8, 8, 128], strides = [1, 1, 1, 1]} : vector<2x10x8x128xf32> to vector<2x8x8x128xf32>
    %111 = vector.broadcast %109 : vector<1x1x1x128xf32> to vector<2x8x8x128xf32>
    %112 = arith.mulf %110, %111 : vector<2x8x8x128xf32>
    %113 = arith.addf %107, %112 : vector<2x8x8x128xf32>
    %c0_90 = arith.constant 0 : index
    %c0_91 = arith.constant 0 : index
    %c8_92 = arith.constant 8 : index
    %c0_93 = arith.constant 0 : index
    %114 = vector.load %arg14[%c0_90, %c0_91, %c8_92, %c0_93] : memref<2x10x17x128xf32, #tpu.memory_space<vmem>>, vector<2x10x8x128xf32>
    %c1_94 = arith.constant 1 : index
    %c0_95 = arith.constant 0 : index
    %115 = vector.load %arg7[%c1_94, %c0_95] : memref<9x128xf32, #tpu.memory_space<vmem>>, vector<1x128xf32>
    %116 = vector.shape_cast %115 : vector<1x128xf32> to vector<1x1x1x128xf32>
    %117 = vector.extract_strided_slice %114 {offsets = [0, 0, 0, 0], sizes = [2, 8, 8, 128], strides = [1, 1, 1, 1]} : vector<2x10x8x128xf32> to vector<2x8x8x128xf32>
    %118 = vector.broadcast %116 : vector<1x1x1x128xf32> to vector<2x8x8x128xf32>
    %119 = arith.mulf %117, %118 : vector<2x8x8x128xf32>
    %120 = arith.addf %113, %119 : vector<2x8x8x128xf32>
    %c4_96 = arith.constant 4 : index
    %c0_97 = arith.constant 0 : index
    %121 = vector.load %arg7[%c4_96, %c0_97] : memref<9x128xf32, #tpu.memory_space<vmem>>, vector<1x128xf32>
    %122 = vector.shape_cast %121 : vector<1x128xf32> to vector<1x1x1x128xf32>
    %123 = vector.extract_strided_slice %114 {offsets = [0, 1, 0, 0], sizes = [2, 8, 8, 128], strides = [1, 1, 1, 1]} : vector<2x10x8x128xf32> to vector<2x8x8x128xf32>
    %124 = vector.broadcast %122 : vector<1x1x1x128xf32> to vector<2x8x8x128xf32>
    %125 = arith.mulf %123, %124 : vector<2x8x8x128xf32>
    %126 = arith.addf %120, %125 : vector<2x8x8x128xf32>
    %c7_98 = arith.constant 7 : index
    %c0_99 = arith.constant 0 : index
    %127 = vector.load %arg7[%c7_98, %c0_99] : memref<9x128xf32, #tpu.memory_space<vmem>>, vector<1x128xf32>
    %128 = vector.shape_cast %127 : vector<1x128xf32> to vector<1x1x1x128xf32>
    %129 = vector.extract_strided_slice %114 {offsets = [0, 2, 0, 0], sizes = [2, 8, 8, 128], strides = [1, 1, 1, 1]} : vector<2x10x8x128xf32> to vector<2x8x8x128xf32>
    %130 = vector.broadcast %128 : vector<1x1x1x128xf32> to vector<2x8x8x128xf32>
    %131 = arith.mulf %129, %130 : vector<2x8x8x128xf32>
    %132 = arith.addf %126, %131 : vector<2x8x8x128xf32>
    %c0_100 = arith.constant 0 : index
    %c0_101 = arith.constant 0 : index
    %c9_102 = arith.constant 9 : index
    %c0_103 = arith.constant 0 : index
    %133 = vector.load %arg14[%c0_100, %c0_101, %c9_102, %c0_103] : memref<2x10x17x128xf32, #tpu.memory_space<vmem>>, vector<2x10x8x128xf32>
    %c2_104 = arith.constant 2 : index
    %c0_105 = arith.constant 0 : index
    %134 = vector.load %arg7[%c2_104, %c0_105] : memref<9x128xf32, #tpu.memory_space<vmem>>, vector<1x128xf32>
    %135 = vector.shape_cast %134 : vector<1x128xf32> to vector<1x1x1x128xf32>
    %136 = vector.extract_strided_slice %133 {offsets = [0, 0, 0, 0], sizes = [2, 8, 8, 128], strides = [1, 1, 1, 1]} : vector<2x10x8x128xf32> to vector<2x8x8x128xf32>
    %137 = vector.broadcast %135 : vector<1x1x1x128xf32> to vector<2x8x8x128xf32>
    %138 = arith.mulf %136, %137 : vector<2x8x8x128xf32>
    %139 = arith.addf %132, %138 : vector<2x8x8x128xf32>
    %c5_106 = arith.constant 5 : index
    %c0_107 = arith.constant 0 : index
    %140 = vector.load %arg7[%c5_106, %c0_107] : memref<9x128xf32, #tpu.memory_space<vmem>>, vector<1x128xf32>
    %141 = vector.shape_cast %140 : vector<1x128xf32> to vector<1x1x1x128xf32>
    %142 = vector.extract_strided_slice %133 {offsets = [0, 1, 0, 0], sizes = [2, 8, 8, 128], strides = [1, 1, 1, 1]} : vector<2x10x8x128xf32> to vector<2x8x8x128xf32>
    %143 = vector.broadcast %141 : vector<1x1x1x128xf32> to vector<2x8x8x128xf32>
    %144 = arith.mulf %142, %143 : vector<2x8x8x128xf32>
    %145 = arith.addf %139, %144 : vector<2x8x8x128xf32>
    %c8_108 = arith.constant 8 : index
    %c0_109 = arith.constant 0 : index
    %146 = vector.load %arg7[%c8_108, %c0_109] : memref<9x128xf32, #tpu.memory_space<vmem>>, vector<1x128xf32>
    %147 = vector.shape_cast %146 : vector<1x128xf32> to vector<1x1x1x128xf32>
    %148 = vector.extract_strided_slice %133 {offsets = [0, 2, 0, 0], sizes = [2, 8, 8, 128], strides = [1, 1, 1, 1]} : vector<2x10x8x128xf32> to vector<2x8x8x128xf32>
    %149 = vector.broadcast %147 : vector<1x1x1x128xf32> to vector<2x8x8x128xf32>
    %150 = arith.mulf %148, %149 : vector<2x8x8x128xf32>
    %151 = arith.addf %145, %150 : vector<2x8x8x128xf32>
    %152 = vector.shape_cast %151 : vector<2x8x8x128xf32> to vector<128x128xf32>
    %cst_110 = arith.constant 5.000000e-01 : f32
    %153 = vector.broadcast %cst_110 : f32 to vector<128x128xf32>
    %154 = arith.mulf %153, %82 : vector<128x128xf32>
    %cst_111 = arith.constant 0.707106769 : f32
    %155 = vector.broadcast %cst_111 : f32 to vector<128x128xf32>
    %156 = arith.mulf %82, %155 : vector<128x128xf32>
    %157 = math.erf %156 : vector<128x128xf32>
    %cst_112 = arith.constant 1.000000e+00 : f32
    %158 = vector.broadcast %cst_112 : f32 to vector<128x128xf32>
    %159 = arith.addf %158, %157 : vector<128x128xf32>
    %160 = arith.mulf %154, %159 : vector<128x128xf32>
    %161 = arith.mulf %160, %152 : vector<128x128xf32>
    %162 = arith.truncf %161 : vector<128x128xf32> to vector<128x128xbf16>
    %c0_113 = arith.constant 0 : index
    %c0_114 = arith.constant 0 : index
    %163 = vector.load %arg10[%c0_113, %c0_114] : memref<128x64xbf16, #tpu.memory_space<vmem>>, vector<128x64xbf16>
    %cst_115 = arith.constant dense<0.000000e+00> : vector<128x64xf32>
    %164 = tpu.matmul %162, %163, %cst_115 {dimension_numbers = #tpu.dot_dimension_numbers<[1], [0], [0], [1], [0, 0, 1, 1], [], []>} : vector<128x128xbf16>, vector<128x64xbf16>, vector<128x64xf32> -> vector<128x64xf32>
    %c0_116 = arith.constant 0 : index
    %c0_117 = arith.constant 0 : index
    %165 = vector.load %arg11[%c0_116, %c0_117] : memref<1x64xf32, #tpu.memory_space<vmem>>, vector<1x64xf32>
    %166 = vector.broadcast %165 : vector<1x64xf32> to vector<128x64xf32>
    %167 = arith.addf %164, %166 : vector<128x64xf32>
    %168 = vector.shape_cast %167 : vector<128x64xf32> to vector<2x8x8x64xf32>
    %c0_118 = arith.constant 0 : index
    %c0_119 = arith.constant 0 : index
    %c0_120 = arith.constant 0 : index
    %c0_121 = arith.constant 0 : index
    %169 = vector.load %arg12[%c0_118, %c0_119, %c0_120, %c0_121] : memref<2x8x8x64xf32, #tpu.memory_space<vmem>>, vector<2x8x8x64xf32>
    tpu.vector_store %arg12[%c0_118, %c0_119, %c0_120, %c0_121], %168 {strides = array<i32>} : memref<2x8x8x64xf32, #tpu.memory_space<vmem>>, vector<2x8x8x64xf32>,
    return
  }
  func.func @transform_0(%arg0: i32) -> (i32, i32, i32, i32) {
    %c0_i32 = arith.constant 0 : i32
    %c0_i32_0 = arith.constant 0 : i32
    %c0_i32_1 = arith.constant 0 : i32
    %c0_i32_2 = arith.constant 0 : i32
    return %arg0, %c0_i32, %c0_i32_0, %c0_i32_1 : i32, i32, i32, i32
  }
  func.func @transform_1(%arg0: i32) -> (i32, i32) {
    %c0_i32 = arith.constant 0 : i32
    %c0_i32_0 = arith.constant 0 : i32
    %c0_i32_1 = arith.constant 0 : i32
    return %c0_i32, %c0_i32_0 : i32, i32
  }
  func.func @transform_2(%arg0: i32) -> (i32, i32) {
    %c0_i32 = arith.constant 0 : i32
    %c0_i32_0 = arith.constant 0 : i32
    %c0_i32_1 = arith.constant 0 : i32
    return %c0_i32, %c0_i32_0 : i32, i32
  }
  func.func @transform_3(%arg0: i32) -> (i32, i32) {
    %c0_i32 = arith.constant 0 : i32
    %c0_i32_0 = arith.constant 0 : i32
    %c0_i32_1 = arith.constant 0 : i32
    return %c0_i32, %c0_i32_0 : i32, i32
  }
  func.func @transform_4(%arg0: i32) -> (i32, i32) {
    %c0_i32 = arith.constant 0 : i32
    %c0_i32_0 = arith.constant 0 : i32
    %c0_i32_1 = arith.constant 0 : i32
    return %c0_i32, %c0_i32_0 : i32, i32
  }
  func.func @transform_5(%arg0: i32) -> (i32, i32) {
    %c0_i32 = arith.constant 0 : i32
    %c0_i32_0 = arith.constant 0 : i32
    %c0_i32_1 = arith.constant 0 : i32
    return %c0_i32, %c0_i32_0 : i32, i32
  }
  func.func @transform_6(%arg0: i32) -> (i32, i32) {
    %c0_i32 = arith.constant 0 : i32
    %c0_i32_0 = arith.constant 0 : i32
    %c0_i32_1 = arith.constant 0 : i32
    return %c0_i32, %c0_i32_0 : i32, i32
  }
  func.func @transform_7(%arg0: i32) -> (i32, i32) {
    %c0_i32 = arith.constant 0 : i32
    %c0_i32_0 = arith.constant 0 : i32
    %c0_i32_1 = arith.constant 0 : i32
    return %c0_i32, %c0_i32_0 : i32, i32
  }
  func.func @transform_8(%arg0: i32) -> (i32, i32) {
    %c0_i32 = arith.constant 0 : i32
    %c0_i32_0 = arith.constant 0 : i32
    %c0_i32_1 = arith.constant 0 : i32
    return %c0_i32, %c0_i32_0 : i32, i32
  }
  func.func @transform_9(%arg0: i32) -> (i32, i32) {
    %c0_i32 = arith.constant 0 : i32
    %c0_i32_0 = arith.constant 0 : i32
    %c0_i32_1 = arith.constant 0 : i32
    return %c0_i32, %c0_i32_0 : i32, i32
  }
  func.func @transform_10(%arg0: i32) -> (i32, i32) {
    %c0_i32 = arith.constant 0 : i32
    %c0_i32_0 = arith.constant 0 : i32
    %c0_i32_1 = arith.constant 0 : i32
    return %c0_i32, %c0_i32_0 : i32, i32
  }
  func.func @transform_11(%arg0: i32) -> (i32, i32, i32, i32) {
    %c0_i32 = arith.constant 0 : i32
    %c0_i32_0 = arith.constant 0 : i32
    %c0_i32_1 = arith.constant 0 : i32
    %c0_i32_2 = arith.constant 0 : i32
    return %arg0, %c0_i32, %c0_i32_0, %c0_i32_1 : i32, i32, i32, i32
  }
}

</mosaic_0001>

<llo_original>
// kernel: feedforward_pallas.1
$region0: #{feedforward_pallas.1}
  #allocation0 [shape = 'u32[]', space=smem, size = 0x4, offset = 0x4, fixed_abs, tag = 'smem constant byte address 0x4 - core index']
  #allocation1 [shape = 'u32[144,128]{1,0:T(1,128)}', space=vmem, size = 0x12000, scoped, tag = 'internal scratch']
  #allocation2 [shape = 'f32[2,10,17,128]{3,2,1,0:T(8,128)}', space=vmem, size = 0x3c000, scoped, tag = 'scratch operand']
  #allocation3 [shape = 'f32[2,10,17,128]{3,2,1,0:T(8,128)}', space=vmem, size = 0x3c000, scoped, tag = 'scratch operand']
  %s0 = inlined_call_operand.vmem [shape: f32[2,8,8,64], index: 0, kind: input, shape index: {}]
  %s1 = inlined_call_operand.vmem [shape: bf16[64,128], index: 1, kind: input, shape index: {}]
  %s2 = inlined_call_operand.vmem [shape: bf16[64,128], index: 2, kind: input, shape index: {}]
  %s3 = inlined_call_operand.vmem [shape: f32[1,128], index: 3, kind: input, shape index: {}]
  %s4 = inlined_call_operand.vmem [shape: f32[1,128], index: 4, kind: input, shape index: {}]
  %s5 = inlined_call_operand.vmem [shape: f32[9,128], index: 5, kind: input, shape index: {}]
  %s6 = inlined_call_operand.vmem [shape: f32[9,128], index: 6, kind: input, shape index: {}]
  %s7 = inlined_call_operand.vmem [shape: f32[1,128], index: 7, kind: input, shape index: {}]
  %s8 = inlined_call_operand.vmem [shape: f32[1,128], index: 8, kind: input, shape index: {}]
  %s9 = inlined_call_operand.vmem [shape: bf16[128,64], index: 9, kind: input, shape index: {}]
  %s10 = inlined_call_operand.vmem [shape: f32[1,64], index: 10, kind: input, shape index: {}]
  %s11 = inlined_call_operand.hbm [shape: f32[2,8,8,64], index: 11, kind: output, shape index: {}]
  %s12 = sld [smem:[#allocation0]]
  $region54: #{feedforward_pallas.1} parent=0
    _
  %s14 = ssub.s32 1, %s12
  %s15 = scalar_select 0, %s14, %s12
  $region1: #{feedforward_pallas.1} parent=0
    #allocation4 [shape = 'u8[65536]{0}', space=vmem, size = 0x10000, scoped, tag = 'output window, operand 0, single buffered']
    #allocation5 [shape = 's32[1]{0}', space=sflag, size = 0x4, scoped, tag = 'scoped memory for feedforward_pallas.1']
    %16 = vsyncpa [#allocation5], 0
    // Predicated region
    $region2: #{feedforward_pallas.1} parent=1 // pred_check
      _
    $region3: #{feedforward_pallas.1} parent=1 // pred_check_branch
      %18 = sbr.rel (0) target = $region5
    $region4: #{feedforward_pallas.1} parent=1 // pred_region
      _
    $region5: #{feedforward_pallas.1} parent=1 // pred_fallthru
      _
    // Predicated region
    $region6: #{feedforward_pallas.1} parent=1 // pred_check
      _
    $region7: #{feedforward_pallas.1} parent=1 // pred_check_branch
      %20 = sbr.rel (0) target = $region9
    $region8: #{feedforward_pallas.1} parent=1 // pred_region
      _
    $region9: #{feedforward_pallas.1} parent=1 // pred_fallthru
      _
    // Predicated region
    $region10: #{feedforward_pallas.1} parent=1 // pred_check
      _
    $region11: #{feedforward_pallas.1} parent=1 // pred_check_branch
      %22 = sbr.rel (0) target = $region13
    $region12: #{feedforward_pallas.1} parent=1 // pred_region
      _
    $region13: #{feedforward_pallas.1} parent=1 // pred_fallthru
      _
    // Predicated region
    $region14: #{feedforward_pallas.1} parent=1 // pred_check
      _
    $region15: #{feedforward_pallas.1} parent=1 // pred_check_branch
      %24 = sbr.rel (0) target = $region17
    $region16: #{feedforward_pallas.1} parent=1 // pred_region
      _
    $region17: #{feedforward_pallas.1} parent=1 // pred_fallthru
      _
    // Predicated region
    $region18: #{feedforward_pallas.1} parent=1 // pred_check
      _
    $region19: #{feedforward_pallas.1} parent=1 // pred_check_branch
      %26 = sbr.rel (0) target = $region21
    $region20: #{feedforward_pallas.1} parent=1 // pred_region
      _
    $region21: #{feedforward_pallas.1} parent=1 // pred_fallthru
      _
    // Predicated region
    $region22: #{feedforward_pallas.1} parent=1 // pred_check
      _
    $region23: #{feedforward_pallas.1} parent=1 // pred_check_branch
      %28 = sbr.rel (0) target = $region25
    $region24: #{feedforward_pallas.1} parent=1 // pred_region
      _
    $region25: #{feedforward_pallas.1} parent=1 // pred_fallthru
      _
    // Predicated region
    $region26: #{feedforward_pallas.1} parent=1 // pred_check
      _
    $region27: #{feedforward_pallas.1} parent=1 // pred_check_branch
      %30 = sbr.rel (0) target = $region29
    $region28: #{feedforward_pallas.1} parent=1 // pred_region
      _
    $region29: #{feedforward_pallas.1} parent=1 // pred_fallthru
      _
    // Predicated region
    $region30: #{feedforward_pallas.1} parent=1 // pred_check
      _
    $region31: #{feedforward_pallas.1} parent=1 // pred_check_branch
      %32 = sbr.rel (0) target = $region33
    $region32: #{feedforward_pallas.1} parent=1 // pred_region
      _
    $region33: #{feedforward_pallas.1} parent=1 // pred_fallthru
      _
    // Predicated region
    $region34: #{feedforward_pallas.1} parent=1 // pred_check
      _
    $region35: #{feedforward_pallas.1} parent=1 // pred_check_branch
      %34 = sbr.rel (0) target = $region37
    $region36: #{feedforward_pallas.1} parent=1 // pred_region
      _
    $region37: #{feedforward_pallas.1} parent=1 // pred_fallthru
      _
    // Predicated region
    $region38: #{feedforward_pallas.1} parent=1 // pred_check
      _
    $region39: #{feedforward_pallas.1} parent=1 // pred_check_branch
      %36 = sbr.rel (0) target = $region41
    $region40: #{feedforward_pallas.1} parent=1 // pred_region
      _
    $region41: #{feedforward_pallas.1} parent=1 // pred_fallthru
      _
    // Predicated region
    $region42: #{feedforward_pallas.1} parent=1 // pred_check
      _
    $region43: #{feedforward_pallas.1} parent=1 // pred_check_branch
      %38 = sbr.rel (0) target = $region45
    $region44: #{feedforward_pallas.1} parent=1 // pred_region
      _
    $region45: #{feedforward_pallas.1} parent=1 // pred_fallthru
      _
    %v40 = vld [vmem:[%s0] sm:$0xff]
    %v41 = vld [vmem:[%s0 + $0x8] sm:$0xff]
    %v42 = vld [vmem:[%s0 + $0x10] sm:$0xff]
    %v43 = vld [vmem:[%s0 + $0x18] sm:$0xff]
    %v44 = vld [vmem:[%s0 + $0x20] sm:$0xff]
    %v45 = vld [vmem:[%s0 + $0x28] sm:$0xff]
    %v46 = vld [vmem:[%s0 + $0x30] sm:$0xff]
    %v47 = vld [vmem:[%s0 + $0x38] sm:$0xff]
    %v48 = vld [vmem:[%s0 + $0x40] sm:$0xff]
    %v49 = vld [vmem:[%s0 + $0x48] sm:$0xff]
    %v50 = vld [vmem:[%s0 + $0x50] sm:$0xff]
    %v51 = vld [vmem:[%s0 + $0x58] sm:$0xff]
    %v52 = vld [vmem:[%s0 + $0x60] sm:$0xff]
    %v53 = vld [vmem:[%s0 + $0x68] sm:$0xff]
    %v54 = vld [vmem:[%s0 + $0x70] sm:$0xff]
    %v55 = vld [vmem:[%s0 + $0x78] sm:$0xff]
    %v56 = vpack.c.bf16 %v41, %v40
    %v57 = vpack.c.bf16 %v43, %v42
    %v58 = vpack.c.bf16 %v45, %v44
    %v59 = vpack.c.bf16 %v47, %v46
    %v60 = vpack.c.bf16 %v49, %v48
    %v61 = vpack.c.bf16 %v51, %v50
    %v62 = vpack.c.bf16 %v53, %v52
    %v63 = vpack.c.bf16 %v55, %v54
    %v64 = vld [vmem:[%s1] sm:$0xf]
    %v65 = vld [vmem:[%s1 + $0x4] sm:$0xf]
    %v66 = vld [vmem:[%s1 + $0x8] sm:$0xf]
    %v67 = vld [vmem:[%s1 + $0xc] sm:$0xf]
    %v68 = vld [vmem:[%s1 + $0x10] sm:$0xf]
    %v69 = vld [vmem:[%s1 + $0x14] sm:$0xf]
    %v70 = vld [vmem:[%s1 + $0x18] sm:$0xf]
    %v71 = vld [vmem:[%s1 + $0x1c] sm:$0xf]
    %v72 = vld [vmem:[%s3] sm:$0x1]
    %v74 = vlaneseq
    %v75 = vshrl.u32 %v74, 7
    %v76 = vsub.s32 0, %v75
    %v77 = vrot.slane %v72, %v76
    %v87 = vunpack.c.l.b16 %v64
    %v88 = vunpack.c.l.b16 %v65
    %v89 = vunpack.c.l.b16 %v66
    %v90 = vunpack.c.l.b16 %v67
    %v91 = vunpack.c.l.b16 %v68
    %v92 = vunpack.c.l.b16 %v69
    %v93 = vunpack.c.l.b16 %v70
    %v94 = vunpack.c.l.b16 %v71
    %v95 = vpack.c.b16 %v88, %v87
    %v96 = vpack.c.b16 %v90, %v89
    %v97 = vpack.c.b16 %v92, %v91
    %v98 = vpack.c.b16 %v94, %v93
    %vm103 = vcmask 523264
    %v105 = vsel %vm103, %v56, 0
    %v108 = vsel %vm103, %v57, 0
    %v111 = vsel %vm103, %v58, 0
    %v114 = vsel %vm103, %v59, 0
    %v117 = vsel %vm103, %v60, 0
    %v120 = vsel %vm103, %v61, 0
    %v123 = vsel %vm103, %v62, 0
    %v126 = vsel %vm103, %v63, 0
    %128 = vmatprep.subr.bf16.mxu0 0
    %129 = vmatpush1.bf16.msra.mxu0 0
    %130 = vmatprep.subr.bf16.mxu0 0
    %131 = vmatpush1.bf16.msra.mxu0 0
    %132 = vmatprep.subr.bf16.mxu0 0
    %133 = vmatpush1.bf16.msra.mxu0 0
    %134 = vmatprep.subr.bf16.mxu0 0
    %135 = vmatpush1.bf16.msra.mxu0 0
    %136 = vmatprep.subr.bf16.mxu0 0
    %137 = vmatpush1.bf16.msra.mxu0 %v98
    %138 = vmatprep.subr.bf16.mxu0 0
    %139 = vmatpush1.bf16.msra.mxu0 %v97
    %140 = vmatprep.subr.bf16.mxu0 0
    %141 = vmatpush1.bf16.msra.mxu0 %v96
    %142 = vmatprep.subr.bf16.mxu0 0
    %143 = vmatpush1.bf16.msra.mxu0 %v95
    %144 = vmatprep.subr.bf16.mxu0 0
    %145 = vmatpush2.bf16.msra.mxu0 0
    %146 = vmatprep.subr.bf16.mxu0 0
    %147 = vmatpush2.bf16.msra.mxu0 0
    %148 = vmatprep.subr.bf16.mxu0 0
    %149 = vmatpush2.bf16.msra.mxu0 0
    %150 = vmatprep.subr.bf16.mxu0 0
    %151 = vmatpush2.bf16.msra.mxu0 0
    %152 = vmatprep.subr.bf16.mxu0 0
    %153 = vmatpush2.bf16.msra.mxu0 0
    %154 = vmatprep.subr.bf16.mxu0 0
    %155 = vmatpush2.bf16.msra.mxu0 0
    %156 = vmatprep.subr.bf16.mxu0 0
    %157 = vmatpush2.bf16.msra.mxu0 0
    %158 = vmatprep.subr.bf16.mxu0 0
    %159 = vmatpush2.bf16.msra.mxu0 0
    %160 = vmatprep.mubr.bf16.mxu0 0
    %161 = vmatmul.mubr.bf16.gmra.mxu0 %v105
    %v162 = vpop.f32.mrf.mxu0
    %v163 = vadd.f32 %v77, %v162
    %v164 = vpop.f32.mrf.mxu0
    %v165 = vpop.f32.mrf.mxu0
    %v166 = vadd.f32 %v77, %v165
    %v167 = vpop.f32.mrf.mxu0
    %168 = vmatprep.mubr.bf16.mxu0 0
    %169 = vmatmul.mubr.bf16.gmra.mxu0 %v108
    %v170 = vpop.f32.mrf.mxu0
    %v171 = vadd.f32 %v77, %v170
    %v172 = vpop.f32.mrf.mxu0
    %v173 = vpop.f32.mrf.mxu0
    %v174 = vadd.f32 %v77, %v173
    %v175 = vpop.f32.mrf.mxu0
    %176 = vmatprep.mubr.bf16.mxu0 0
    %177 = vmatmul.mubr.bf16.gmra.mxu0 %v111
    %v178 = vpop.f32.mrf.mxu0
    %v179 = vadd.f32 %v77, %v178
    %v180 = vpop.f32.mrf.mxu0
    %v181 = vpop.f32.mrf.mxu0
    %v182 = vadd.f32 %v77, %v181
    %v183 = vpop.f32.mrf.mxu0
    %184 = vmatprep.mubr.bf16.mxu0 0
    %185 = vmatmul.mubr.bf16.gmra.mxu0 %v114
    %v186 = vpop.f32.mrf.mxu0
    %v187 = vadd.f32 %v77, %v186
    %v188 = vpop.f32.mrf.mxu0
    %v189 = vpop.f32.mrf.mxu0
    %v190 = vadd.f32 %v77, %v189
    %v191 = vpop.f32.mrf.mxu0
    %192 = vmatprep.mubr.bf16.mxu0 0
    %193 = vmatmul.mubr.bf16.gmra.mxu0 %v117
    %v194 = vpop.f32.mrf.mxu0
    %v195 = vadd.f32 %v77, %v194
    %v196 = vpop.f32.mrf.mxu0
    %v197 = vpop.f32.mrf.mxu0
    %v198 = vadd.f32 %v77, %v197
    %v199 = vpop.f32.mrf.mxu0
    %200 = vmatprep.mubr.bf16.mxu0 0
    %201 = vmatmul.mubr.bf16.gmra.mxu0 %v120
    %v202 = vpop.f32.mrf.mxu0
    %v203 = vadd.f32 %v77, %v202
    %v204 = vpop.f32.mrf.mxu0
    %v205 = vpop.f32.mrf.mxu0
    %v206 = vadd.f32 %v77, %v205
    %v207 = vpop.f32.mrf.mxu0
    %208 = vmatprep.mubr.bf16.mxu0 0
    %209 = vmatmul.mubr.bf16.gmra.mxu0 %v123
    %v210 = vpop.f32.mrf.mxu0
    %v211 = vadd.f32 %v77, %v210
    %v212 = vpop.f32.mrf.mxu0
    %v213 = vpop.f32.mrf.mxu0
    %v214 = vadd.f32 %v77, %v213
    %v215 = vpop.f32.mrf.mxu0
    %216 = vmatprep.mubr.bf16.mxu0 0
    %217 = vmatmul.mubr.bf16.gmra.mxu0 %v126
    %v218 = vpop.f32.mrf.mxu0
    %v219 = vadd.f32 %v77, %v218
    %v220 = vpop.f32.mrf.mxu0
    %v221 = vpop.f32.mrf.mxu0
    %v222 = vadd.f32 %v77, %v221
    %v223 = vpop.f32.mrf.mxu0
    %224 = vdwg.mxu0
    %v225 = vld [vmem:[%s2] sm:$0xf]
    %v226 = vld [vmem:[%s2 + $0x4] sm:$0xf]
    %v227 = vld [vmem:[%s2 + $0x8] sm:$0xf]
    %v228 = vld [vmem:[%s2 + $0xc] sm:$0xf]
    %v229 = vld [vmem:[%s2 + $0x10] sm:$0xf]
    %v230 = vld [vmem:[%s2 + $0x14] sm:$0xf]
    %v231 = vld [vmem:[%s2 + $0x18] sm:$0xf]
    %v232 = vld [vmem:[%s2 + $0x1c] sm:$0xf]
    %v233 = vld [vmem:[%s4] sm:$0x1]
    %v235 = vlaneseq
    %v236 = vshrl.u32 %v235, 7
    %v237 = vsub.s32 0, %v236
    %v238 = vrot.slane %v233, %v237
    %v248 = vunpack.c.l.b16 %v225
    %v249 = vunpack.c.l.b16 %v226
    %v250 = vunpack.c.l.b16 %v227
    %v251 = vunpack.c.l.b16 %v228
    %v252 = vunpack.c.l.b16 %v229
    %v253 = vunpack.c.l.b16 %v230
    %v254 = vunpack.c.l.b16 %v231
    %v255 = vunpack.c.l.b16 %v232
    %v256 = vpack.c.b16 %v249, %v248
    %v257 = vpack.c.b16 %v251, %v250
    %v258 = vpack.c.b16 %v253, %v252
    %v259 = vpack.c.b16 %v255, %v254
    %264 = vmatprep.subr.bf16.mxu0 0
    %265 = vmatpush1.bf16.msra.mxu0 0
    %266 = vmatprep.subr.bf16.mxu0 0
    %267 = vmatpush1.bf16.msra.mxu0 0
    %268 = vmatprep.subr.bf16.mxu0 0
    %269 = vmatpush1.bf16.msra.mxu0 0
    %270 = vmatprep.subr.bf16.mxu0 0
    %271 = vmatpush1.bf16.msra.mxu0 0
    %272 = vmatprep.subr.bf16.mxu0 0
    %273 = vmatpush1.bf16.msra.mxu0 %v259
    %274 = vmatprep.subr.bf16.mxu0 0
    %275 = vmatpush1.bf16.msra.mxu0 %v258
    %276 = vmatprep.subr.bf16.mxu0 0
    %277 = vmatpush1.bf16.msra.mxu0 %v257
    %278 = vmatprep.subr.bf16.mxu0 0
    %279 = vmatpush1.bf16.msra.mxu0 %v256
    %280 = vmatprep.subr.bf16.mxu0 0
    %281 = vmatpush2.bf16.msra.mxu0 0
    %282 = vmatprep.subr.bf16.mxu0 0
    %283 = vmatpush2.bf16.msra.mxu0 0
    %284 = vmatprep.subr.bf16.mxu0 0
    %285 = vmatpush2.bf16.msra.mxu0 0
    %286 = vmatprep.subr.bf16.mxu0 0
    %287 = vmatpush2.bf16.msra.mxu0 0
    %288 = vmatprep.subr.bf16.mxu0 0
    %289 = vmatpush2.bf16.msra.mxu0 0
    %290 = vmatprep.subr.bf16.mxu0 0
    %291 = vmatpush2.bf16.msra.mxu0 0
    %292 = vmatprep.subr.bf16.mxu0 0
    %293 = vmatpush2.bf16.msra.mxu0 0
    %294 = vmatprep.subr.bf16.mxu0 0
    %295 = vmatpush2.bf16.msra.mxu0 0
    %296 = vmatprep.mubr.bf16.mxu0 0
    %297 = vmatmul.mubr.bf16.gmra.mxu0 %v105
    %v298 = vpop.f32.mrf.mxu0
    %v299 = vadd.f32 %v238, %v298
    %v300 = vpop.f32.mrf.mxu0
    %v301 = vpop.f32.mrf.mxu0
    %v302 = vadd.f32 %v238, %v301
    %v303 = vpop.f32.mrf.mxu0
    %304 = vmatprep.mubr.bf16.mxu0 0
    %305 = vmatmul.mubr.bf16.gmra.mxu0 %v108
    %v306 = vpop.f32.mrf.mxu0
    %v307 = vadd.f32 %v238, %v306
    %v308 = vpop.f32.mrf.mxu0
    %v309 = vpop.f32.mrf.mxu0
    %v310 = vadd.f32 %v238, %v309
    %v311 = vpop.f32.mrf.mxu0
    %312 = vmatprep.mubr.bf16.mxu0 0
    %313 = vmatmul.mubr.bf16.gmra.mxu0 %v111
    %v314 = vpop.f32.mrf.mxu0
    %v315 = vadd.f32 %v238, %v314
    %v316 = vpop.f32.mrf.mxu0
    %v317 = vpop.f32.mrf.mxu0
    %v318 = vadd.f32 %v238, %v317
    %v319 = vpop.f32.mrf.mxu0
    %320 = vmatprep.mubr.bf16.mxu0 0
    %321 = vmatmul.mubr.bf16.gmra.mxu0 %v114
    %v322 = vpop.f32.mrf.mxu0
    %v323 = vadd.f32 %v238, %v322
    %v324 = vpop.f32.mrf.mxu0
    %v325 = vpop.f32.mrf.mxu0
    %v326 = vadd.f32 %v238, %v325
    %v327 = vpop.f32.mrf.mxu0
    %328 = vmatprep.mubr.bf16.mxu0 0
    %329 = vmatmul.mubr.bf16.gmra.mxu0 %v117
    %v330 = vpop.f32.mrf.mxu0
    %v331 = vadd.f32 %v238, %v330
    %v332 = vpop.f32.mrf.mxu0
    %v333 = vpop.f32.mrf.mxu0
    %v334 = vadd.f32 %v238, %v333
    %v335 = vpop.f32.mrf.mxu0
    %336 = vmatprep.mubr.bf16.mxu0 0
    %337 = vmatmul.mubr.bf16.gmra.mxu0 %v120
    %v338 = vpop.f32.mrf.mxu0
    %v339 = vadd.f32 %v238, %v338
    %v340 = vpop.f32.mrf.mxu0
    %v341 = vpop.f32.mrf.mxu0
    %v342 = vadd.f32 %v238, %v341
    %v343 = vpop.f32.mrf.mxu0
    %344 = vmatprep.mubr.bf16.mxu0 0
    %345 = vmatmul.mubr.bf16.gmra.mxu0 %v123
    %v346 = vpop.f32.mrf.mxu0
    %v347 = vadd.f32 %v238, %v346
    %v348 = vpop.f32.mrf.mxu0
    %v349 = vpop.f32.mrf.mxu0
    %v350 = vadd.f32 %v238, %v349
    %v351 = vpop.f32.mrf.mxu0
    %352 = vmatprep.mubr.bf16.mxu0 0
    %353 = vmatmul.mubr.bf16.gmra.mxu0 %v126
    %v354 = vpop.f32.mrf.mxu0
    %v355 = vadd.f32 %v238, %v354
    %v356 = vpop.f32.mrf.mxu0
    %v357 = vpop.f32.mrf.mxu0
    %v358 = vadd.f32 %v238, %v357
    %v359 = vpop.f32.mrf.mxu0
    %360 = vdwg.mxu0
    %361 = vst [vmem:[#allocation2] sm:$0xff] 0.0
    %362 = vst [vmem:[#allocation2 + $0x8] sm:$0xff] 0.0
    %363 = vst [vmem:[#allocation2 + $0x10] sm:$0x1] 0.0
    %364 = vst [vmem:[#allocation2 + $0xf0] sm:$0xff] 0.0
    %365 = vst [vmem:[#allocation2 + $0xf8] sm:$0xff] 0.0
    %366 = vst [vmem:[#allocation2 + $0x100] sm:$0x1] 0.0
    %s367 = scalar_lea.vmem [#allocation2], 216
    %368 = vst [vmem:[%s367] sm:$0xff] 0.0
    %369 = vst [vmem:[%s367 + $0x8] sm:$0xff] 0.0
    %370 = vst [vmem:[%s367 + $0x10] sm:$0x1] 0.0
    %371 = vst [vmem:[%s367 + $0xf0] sm:$0xff] 0.0
    %372 = vst [vmem:[%s367 + $0xf8] sm:$0xff] 0.0
    %373 = vst [vmem:[%s367 + $0x100] sm:$0x1] 0.0
    %374 = vst [vmem:[#allocation2 + $0x7] sm:$0x1] 0.0
    %375 = vst [vmem:[#allocation2 + $0x1f] sm:$0x1] 0.0
    %376 = vst [vmem:[#allocation2 + $0x37] sm:$0x1] 0.0
    %377 = vst [vmem:[#allocation2 + $0x4f] sm:$0x1] 0.0
    %378 = vst [vmem:[#allocation2 + $0x67] sm:$0x1] 0.0
    %379 = vst [vmem:[#allocation2 + $0x7f] sm:$0x1] 0.0
    %380 = vst [vmem:[#allocation2 + $0x97] sm:$0x1] 0.0
    %381 = vst [vmem:[#allocation2 + $0xaf] sm:$0x1] 0.0
    %382 = vst [vmem:[#allocation2 + $0xc7] sm:$0x1] 0.0
    %383 = vst [vmem:[#allocation2 + $0xdf] sm:$0x1] 0.0
    %384 = vst [vmem:[#allocation2 + $0xf7] sm:$0x1] 0.0
    %385 = vst [vmem:[#allocation2 + $0x10f] sm:$0x1] 0.0
    %386 = vst [vmem:[#allocation2 + $0x127] sm:$0x1] 0.0
    %387 = vst [vmem:[#allocation2 + $0x13f] sm:$0x1] 0.0
    %388 = vst [vmem:[#allocation2 + $0x157] sm:$0x1] 0.0
    %389 = vst [vmem:[#allocation2 + $0x16f] sm:$0x1] 0.0
    %390 = vst [vmem:[#allocation2 + $0x187] sm:$0x1] 0.0
    %391 = vst [vmem:[#allocation2 + $0x19f] sm:$0x1] 0.0
    %392 = vst [vmem:[#allocation2 + $0x1b7] sm:$0x1] 0.0
    %393 = vst [vmem:[#allocation2 + $0x1cf] sm:$0x1] 0.0
    %394 = vst [vmem:[#allocation2 + $0x10] sm:$0x1] 0.0
    %395 = vst [vmem:[#allocation2 + $0x28] sm:$0x1] 0.0
    %396 = vst [vmem:[#allocation2 + $0x40] sm:$0x1] 0.0
    %397 = vst [vmem:[#allocation2 + $0x58] sm:$0x1] 0.0
    %398 = vst [vmem:[#allocation2 + $0x70] sm:$0x1] 0.0
    %399 = vst [vmem:[#allocation2 + $0x88] sm:$0x1] 0.0
    %400 = vst [vmem:[#allocation2 + $0xa0] sm:$0x1] 0.0
    %401 = vst [vmem:[#allocation2 + $0xb8] sm:$0x1] 0.0
    %402 = vst [vmem:[#allocation2 + $0xd0] sm:$0x1] 0.0
    %403 = vst [vmem:[#allocation2 + $0xe8] sm:$0x1] 0.0
    %404 = vst [vmem:[#allocation2 + $0x100] sm:$0x1] 0.0
    %405 = vst [vmem:[#allocation2 + $0x118] sm:$0x1] 0.0
    %406 = vst [vmem:[#allocation2 + $0x130] sm:$0x1] 0.0
    %407 = vst [vmem:[#allocation2 + $0x148] sm:$0x1] 0.0
    %408 = vst [vmem:[#allocation2 + $0x160] sm:$0x1] 0.0
    %409 = vst [vmem:[#allocation2 + $0x178] sm:$0x1] 0.0
    %410 = vst [vmem:[#allocation2 + $0x190] sm:$0x1] 0.0
    %411 = vst [vmem:[#allocation2 + $0x1a8] sm:$0x1] 0.0
    %412 = vst [vmem:[#allocation2 + $0x1c0] sm:$0x1] 0.0
    %413 = vst [vmem:[#allocation2 + $0x1d8] sm:$0x1] 0.0
    %s414 = scalar_lea.vmem [#allocation2], 24
    %415 = vst [vmem:[%s414 + $0x8] sm:$0xff] %v163
    %416 = vst [vmem:[%s414 + $0x20] sm:$0xff] %v166
    %417 = vst [vmem:[%s414 + $0x38] sm:$0xff] %v171
    %418 = vst [vmem:[%s414 + $0x50] sm:$0xff] %v174
    %419 = vst [vmem:[%s414 + $0x68] sm:$0xff] %v179
    %420 = vst [vmem:[%s414 + $0x80] sm:$0xff] %v182
    %421 = vst [vmem:[%s414 + $0x98] sm:$0xff] %v187
    %422 = vst [vmem:[%s414 + $0xb0] sm:$0xff] %v190
    %423 = vst [vmem:[%s414 + $0xf8] sm:$0xff] %v195
    %424 = vst [vmem:[%s414 + $0x110] sm:$0xff] %v198
    %425 = vst [vmem:[%s414 + $0x128] sm:$0xff] %v203
    %426 = vst [vmem:[%s414 + $0x140] sm:$0xff] %v206
    %427 = vst [vmem:[%s414 + $0x158] sm:$0xff] %v211
    %428 = vst [vmem:[%s414 + $0x170] sm:$0xff] %v214
    %429 = vst [vmem:[%s414 + $0x188] sm:$0xff] %v219
    %430 = vst [vmem:[%s414 + $0x1a0] sm:$0xff] %v222
    %v431 = vld [vmem:[%s7] sm:$0x1]
    %v433 = vlaneseq
    %v434 = vshrl.u32 %v433, 7
    %v435 = vsub.s32 0, %v434
    %v436 = vrot.slane %v431, %v435
    %v438 = vld [vmem:[#allocation2 + $0x7] sm:$0xff]
    %v439 = vld [vmem:[#allocation2 + $0x1f] sm:$0xff]
    %v440 = vld [vmem:[#allocation2 + $0x37] sm:$0xff]
    %v441 = vld [vmem:[#allocation2 + $0x4f] sm:$0xff]
    %v442 = vld [vmem:[#allocation2 + $0x67] sm:$0xff]
    %v443 = vld [vmem:[#allocation2 + $0x7f] sm:$0xff]
    %v444 = vld [vmem:[#allocation2 + $0x97] sm:$0xff]
    %v445 = vld [vmem:[#allocation2 + $0xaf] sm:$0xff]
    %v446 = vld [vmem:[#allocation2 + $0xc7] sm:$0xff]
    %v447 = vld [vmem:[#allocation2 + $0xdf] sm:$0xff]
    %v448 = vld [vmem:[#allocation2 + $0xf7] sm:$0xff]
    %v449 = vld [vmem:[#allocation2 + $0x10f] sm:$0xff]
    %v450 = vld [vmem:[#allocation2 + $0x127] sm:$0xff]
    %v451 = vld [vmem:[#allocation2 + $0x13f] sm:$0xff]
    %v452 = vld [vmem:[#allocation2 + $0x157] sm:$0xff]
    %v453 = vld [vmem:[#allocation2 + $0x16f] sm:$0xff]
    %v454 = vld [vmem:[#allocation2 + $0x187] sm:$0xff]
    %v455 = vld [vmem:[#allocation2 + $0x19f] sm:$0xff]
    %v456 = vld [vmem:[#allocation2 + $0x1b7] sm:$0xff]
    %v457 = vld [vmem:[#allocation2 + $0x1cf] sm:$0xff]
    %v458 = vld [vmem:[%s5] sm:$0x1]
    %v459 = vlaneseq
    %v460 = vshrl.u32 %v459, 7
    %v461 = vsub.s32 0, %v460
    %v462 = vrot.slane %v458, %v461
    %v463 = vmul.f32 %v438, %v462
    %v464 = vmul.f32 %v439, %v462
    %v465 = vmul.f32 %v440, %v462
    %v466 = vmul.f32 %v441, %v462
    %v467 = vmul.f32 %v442, %v462
    %v468 = vmul.f32 %v443, %v462
    %v469 = vmul.f32 %v444, %v462
    %v470 = vmul.f32 %v445, %v462
    %v471 = vmul.f32 %v448, %v462
    %v472 = vmul.f32 %v449, %v462
    %v473 = vmul.f32 %v450, %v462
    %v474 = vmul.f32 %v451, %v462
    %v475 = vmul.f32 %v452, %v462
    %v476 = vmul.f32 %v453, %v462
    %v477 = vmul.f32 %v454, %v462
    %v478 = vmul.f32 %v455, %v462
    %v479 = vadd.f32 %v436, %v463
    %v480 = vadd.f32 %v436, %v464
    %v481 = vadd.f32 %v436, %v465
    %v482 = vadd.f32 %v436, %v466
    %v483 = vadd.f32 %v436, %v467
    %v484 = vadd.f32 %v436, %v468
    %v485 = vadd.f32 %v436, %v469
    %v486 = vadd.f32 %v436, %v470
    %v487 = vadd.f32 %v436, %v471
    %v488 = vadd.f32 %v436, %v472
    %v489 = vadd.f32 %v436, %v473
    %v490 = vadd.f32 %v436, %v474
    %v491 = vadd.f32 %v436, %v475
    %v492 = vadd.f32 %v436, %v476
    %v493 = vadd.f32 %v436, %v477
    %v494 = vadd.f32 %v436, %v478
    %v495 = vld [vmem:[%s5 + $0x3] sm:$0x1]
    %v496 = vlaneseq
    %v497 = vshrl.u32 %v496, 7
    %v498 = vsub.s32 0, %v497
    %v499 = vrot.slane %v495, %v498
    %v500 = vmul.f32 %v439, %v499
    %v501 = vmul.f32 %v440, %v499
    %v502 = vmul.f32 %v441, %v499
    %v503 = vmul.f32 %v442, %v499
    %v504 = vmul.f32 %v443, %v499
    %v505 = vmul.f32 %v444, %v499
    %v506 = vmul.f32 %v445, %v499
    %v507 = vmul.f32 %v446, %v499
    %v508 = vmul.f32 %v449, %v499
    %v509 = vmul.f32 %v450, %v499
    %v510 = vmul.f32 %v451, %v499
    %v511 = vmul.f32 %v452, %v499
    %v512 = vmul.f32 %v453, %v499
    %v513 = vmul.f32 %v454, %v499
    %v514 = vmul.f32 %v455, %v499
    %v515 = vmul.f32 %v456, %v499
    %v516 = vadd.f32 %v479, %v500
    %v517 = vadd.f32 %v480, %v501
    %v518 = vadd.f32 %v481, %v502
    %v519 = vadd.f32 %v482, %v503
    %v520 = vadd.f32 %v483, %v504
    %v521 = vadd.f32 %v484, %v505
    %v522 = vadd.f32 %v485, %v506
    %v523 = vadd.f32 %v486, %v507
    %v524 = vadd.f32 %v487, %v508
    %v525 = vadd.f32 %v488, %v509
    %v526 = vadd.f32 %v489, %v510
    %v527 = vadd.f32 %v490, %v511
    %v528 = vadd.f32 %v491, %v512
    %v529 = vadd.f32 %v492, %v513
    %v530 = vadd.f32 %v493, %v514
    %v531 = vadd.f32 %v494, %v515
    %v532 = vld [vmem:[%s5 + $0x6] sm:$0x1]
    %v533 = vlaneseq
    %v534 = vshrl.u32 %v533, 7
    %v535 = vsub.s32 0, %v534
    %v536 = vrot.slane %v532, %v535
    %v537 = vmul.f32 %v440, %v536
    %v538 = vmul.f32 %v441, %v536
    %v539 = vmul.f32 %v442, %v536
    %v540 = vmul.f32 %v443, %v536
    %v541 = vmul.f32 %v444, %v536
    %v542 = vmul.f32 %v445, %v536
    %v543 = vmul.f32 %v446, %v536
    %v544 = vmul.f32 %v447, %v536
    %v545 = vmul.f32 %v450, %v536
    %v546 = vmul.f32 %v451, %v536
    %v547 = vmul.f32 %v452, %v536
    %v548 = vmul.f32 %v453, %v536
    %v549 = vmul.f32 %v454, %v536
    %v550 = vmul.f32 %v455, %v536
    %v551 = vmul.f32 %v456, %v536
    %v552 = vmul.f32 %v457, %v536
    %v553 = vadd.f32 %v516, %v537
    %v554 = vadd.f32 %v517, %v538
    %v555 = vadd.f32 %v518, %v539
    %v556 = vadd.f32 %v519, %v540
    %v557 = vadd.f32 %v520, %v541
    %v558 = vadd.f32 %v521, %v542
    %v559 = vadd.f32 %v522, %v543
    %v560 = vadd.f32 %v523, %v544
    %v561 = vadd.f32 %v524, %v545
    %v562 = vadd.f32 %v525, %v546
    %v563 = vadd.f32 %v526, %v547
    %v564 = vadd.f32 %v527, %v548
    %v565 = vadd.f32 %v528, %v549
    %v566 = vadd.f32 %v529, %v550
    %v567 = vadd.f32 %v530, %v551
    %v568 = vadd.f32 %v531, %v552
    %v569 = vld [vmem:[#allocation2 + $0x8] sm:$0xff]
    %v570 = vld [vmem:[#allocation2 + $0x20] sm:$0xff]
    %v571 = vld [vmem:[#allocation2 + $0x38] sm:$0xff]
    %v572 = vld [vmem:[#allocation2 + $0x50] sm:$0xff]
    %v573 = vld [vmem:[#allocation2 + $0x68] sm:$0xff]
    %v574 = vld [vmem:[#allocation2 + $0x80] sm:$0xff]
    %v575 = vld [vmem:[#allocation2 + $0x98] sm:$0xff]
    %v576 = vld [vmem:[#allocation2 + $0xb0] sm:$0xff]
    %v577 = vld [vmem:[#allocation2 + $0xc8] sm:$0xff]
    %v578 = vld [vmem:[#allocation2 + $0xe0] sm:$0xff]
    %v579 = vld [vmem:[#allocation2 + $0xf8] sm:$0xff]
    %v580 = vld [vmem:[#allocation2 + $0x110] sm:$0xff]
    %v581 = vld [vmem:[#allocation2 + $0x128] sm:$0xff]
    %v582 = vld [vmem:[#allocation2 + $0x140] sm:$0xff]
    %v583 = vld [vmem:[#allocation2 + $0x158] sm:$0xff]
    %v584 = vld [vmem:[#allocation2 + $0x170] sm:$0xff]
    %v585 = vld [vmem:[#allocation2 + $0x188] sm:$0xff]
    %v586 = vld [vmem:[#allocation2 + $0x1a0] sm:$0xff]
    %v587 = vld [vmem:[#allocation2 + $0x1b8] sm:$0xff]
    %v588 = vld [vmem:[#allocation2 + $0x1d0] sm:$0xff]
    %v589 = vld [vmem:[%s5 + $0x1] sm:$0x1]
    %v590 = vlaneseq
    %v591 = vshrl.u32 %v590, 7
    %v592 = vsub.s32 0, %v591
    %v593 = vrot.slane %v589, %v592
    %v594 = vmul.f32 %v569, %v593
    %v595 = vmul.f32 %v570, %v593
    %v596 = vmul.f32 %v571, %v593
    %v597 = vmul.f32 %v572, %v593
    %v598 = vmul.f32 %v573, %v593
    %v599 = vmul.f32 %v574, %v593
    %v600 = vmul.f32 %v575, %v593
    %v601 = vmul.f32 %v576, %v593
    %v602 = vmul.f32 %v579, %v593
    %v603 = vmul.f32 %v580, %v593
    %v604 = vmul.f32 %v581, %v593
    %v605 = vmul.f32 %v582, %v593
    %v606 = vmul.f32 %v583, %v593
    %v607 = vmul.f32 %v584, %v593
    %v608 = vmul.f32 %v585, %v593
    %v609 = vmul.f32 %v586, %v593
    %v610 = vadd.f32 %v553, %v594
    %v611 = vadd.f32 %v554, %v595
    %v612 = vadd.f32 %v555, %v596
    %v613 = vadd.f32 %v556, %v597
    %v614 = vadd.f32 %v557, %v598
    %v615 = vadd.f32 %v558, %v599
    %v616 = vadd.f32 %v559, %v600
    %v617 = vadd.f32 %v560, %v601
    %v618 = vadd.f32 %v561, %v602
    %v619 = vadd.f32 %v562, %v603
    %v620 = vadd.f32 %v563, %v604
    %v621 = vadd.f32 %v564, %v605
    %v622 = vadd.f32 %v565, %v606
    %v623 = vadd.f32 %v566, %v607
    %v624 = vadd.f32 %v567, %v608
    %v625 = vadd.f32 %v568, %v609
    %v626 = vld [vmem:[%s5 + $0x4] sm:$0x1]
    %v627 = vlaneseq
    %v628 = vshrl.u32 %v627, 7
    %v629 = vsub.s32 0, %v628
    %v630 = vrot.slane %v626, %v629
    %v631 = vmul.f32 %v570, %v630
    %v632 = vmul.f32 %v571, %v630
    %v633 = vmul.f32 %v572, %v630
    %v634 = vmul.f32 %v573, %v630
    %v635 = vmul.f32 %v574, %v630
    %v636 = vmul.f32 %v575, %v630
    %v637 = vmul.f32 %v576, %v630
    %v638 = vmul.f32 %v577, %v630
    %v639 = vmul.f32 %v580, %v630
    %v640 = vmul.f32 %v581, %v630
    %v641 = vmul.f32 %v582, %v630
    %v642 = vmul.f32 %v583, %v630
    %v643 = vmul.f32 %v584, %v630
    %v644 = vmul.f32 %v585, %v630
    %v645 = vmul.f32 %v586, %v630
    %v646 = vmul.f32 %v587, %v630
    %v647 = vadd.f32 %v610, %v631
    %v648 = vadd.f32 %v611, %v632
    %v649 = vadd.f32 %v612, %v633
    %v650 = vadd.f32 %v613, %v634
    %v651 = vadd.f32 %v614, %v635
    %v652 = vadd.f32 %v615, %v636
    %v653 = vadd.f32 %v616, %v637
    %v654 = vadd.f32 %v617, %v638
    %v655 = vadd.f32 %v618, %v639
    %v656 = vadd.f32 %v619, %v640
    %v657 = vadd.f32 %v620, %v641
    %v658 = vadd.f32 %v621, %v642
    %v659 = vadd.f32 %v622, %v643
    %v660 = vadd.f32 %v623, %v644
    %v661 = vadd.f32 %v624, %v645
    %v662 = vadd.f32 %v625, %v646
    %v663 = vld [vmem:[%s5 + $0x7] sm:$0x1]
    %v664 = vlaneseq
    %v665 = vshrl.u32 %v664, 7
    %v666 = vsub.s32 0, %v665
    %v667 = vrot.slane %v663, %v666
    %v668 = vmul.f32 %v571, %v667
    %v669 = vmul.f32 %v572, %v667
    %v670 = vmul.f32 %v573, %v667
    %v671 = vmul.f32 %v574, %v667
    %v672 = vmul.f32 %v575, %v667
    %v673 = vmul.f32 %v576, %v667
    %v674 = vmul.f32 %v577, %v667
    %v675 = vmul.f32 %v578, %v667
    %v676 = vmul.f32 %v581, %v667
    %v677 = vmul.f32 %v582, %v667
    %v678 = vmul.f32 %v583, %v667
    %v679 = vmul.f32 %v584, %v667
    %v680 = vmul.f32 %v585, %v667
    %v681 = vmul.f32 %v586, %v667
    %v682 = vmul.f32 %v587, %v667
    %v683 = vmul.f32 %v588, %v667
    %v684 = vadd.f32 %v647, %v668
    %v685 = vadd.f32 %v648, %v669
    %v686 = vadd.f32 %v649, %v670
    %v687 = vadd.f32 %v650, %v671
    %v688 = vadd.f32 %v651, %v672
    %v689 = vadd.f32 %v652, %v673
    %v690 = vadd.f32 %v653, %v674
    %v691 = vadd.f32 %v654, %v675
    %v692 = vadd.f32 %v655, %v676
    %v693 = vadd.f32 %v656, %v677
    %v694 = vadd.f32 %v657, %v678
    %v695 = vadd.f32 %v658, %v679
    %v696 = vadd.f32 %v659, %v680
    %v697 = vadd.f32 %v660, %v681
    %v698 = vadd.f32 %v661, %v682
    %v699 = vadd.f32 %v662, %v683
    %v700 = vld [vmem:[#allocation2 + $0x9] sm:$0xff]
    %v701 = vld [vmem:[#allocation2 + $0x21] sm:$0xff]
    %v702 = vld [vmem:[#allocation2 + $0x39] sm:$0xff]
    %v703 = vld [vmem:[#allocation2 + $0x51] sm:$0xff]
    %v704 = vld [vmem:[#allocation2 + $0x69] sm:$0xff]
    %v705 = vld [vmem:[#allocation2 + $0x81] sm:$0xff]
    %v706 = vld [vmem:[#allocation2 + $0x99] sm:$0xff]
    %v707 = vld [vmem:[#allocation2 + $0xb1] sm:$0xff]
    %v708 = vld [vmem:[#allocation2 + $0xc9] sm:$0xff]
    %v709 = vld [vmem:[#allocation2 + $0xe1] sm:$0xff]
    %v710 = vld [vmem:[#allocation2 + $0xf9] sm:$0xff]
    %v711 = vld [vmem:[#allocation2 + $0x111] sm:$0xff]
    %v712 = vld [vmem:[#allocation2 + $0x129] sm:$0xff]
    %v713 = vld [vmem:[#allocation2 + $0x141] sm:$0xff]
    %v714 = vld [vmem:[#allocation2 + $0x159] sm:$0xff]
    %v715 = vld [vmem:[#allocation2 + $0x171] sm:$0xff]
    %v716 = vld [vmem:[#allocation2 + $0x189] sm:$0xff]
    %v717 = vld [vmem:[#allocation2 + $0x1a1] sm:$0xff]
    %v718 = vld [vmem:[#allocation2 + $0x1b9] sm:$0xff]
    %v719 = vld [vmem:[#allocation2 + $0x1d1] sm:$0xff]
    %v720 = vld [vmem:[%s5 + $0x2] sm:$0x1]
    %v721 = vlaneseq
    %v722 = vshrl.u32 %v721, 7
    %v723 = vsub.s32 0, %v722
    %v724 = vrot.slane %v720, %v723
    %v725 = vmul.f32 %v700, %v724
    %v726 = vmul.f32 %v701, %v724
    %v727 = vmul.f32 %v702, %v724
    %v728 = vmul.f32 %v703, %v724
    %v729 = vmul.f32 %v704, %v724
    %v730 = vmul.f32 %v705, %v724
    %v731 = vmul.f32 %v706, %v724
    %v732 = vmul.f32 %v707, %v724
    %v733 = vmul.f32 %v710, %v724
    %v734 = vmul.f32 %v711, %v724
    %v735 = vmul.f32 %v712, %v724
    %v736 = vmul.f32 %v713, %v724
    %v737 = vmul.f32 %v714, %v724
    %v738 = vmul.f32 %v715, %v724
    %v739 = vmul.f32 %v716, %v724
    %v740 = vmul.f32 %v717, %v724
    %v741 = vadd.f32 %v684, %v725
    %v742 = vadd.f32 %v685, %v726
    %v743 = vadd.f32 %v686, %v727
    %v744 = vadd.f32 %v687, %v728
    %v745 = vadd.f32 %v688, %v729
    %v746 = vadd.f32 %v689, %v730
    %v747 = vadd.f32 %v690, %v731
    %v748 = vadd.f32 %v691, %v732
    %v749 = vadd.f32 %v692, %v733
    %v750 = vadd.f32 %v693, %v734
    %v751 = vadd.f32 %v694, %v735
    %v752 = vadd.f32 %v695, %v736
    %v753 = vadd.f32 %v696, %v737
    %v754 = vadd.f32 %v697, %v738
    %v755 = vadd.f32 %v698, %v739
    %v756 = vadd.f32 %v699, %v740
    %v757 = vld [vmem:[%s5 + $0x5] sm:$0x1]
    %v758 = vlaneseq
    %v759 = vshrl.u32 %v758, 7
    %v760 = vsub.s32 0, %v759
    %v761 = vrot.slane %v757, %v760
    %v762 = vmul.f32 %v701, %v761
    %v763 = vmul.f32 %v702, %v761
    %v764 = vmul.f32 %v703, %v761
    %v765 = vmul.f32 %v704, %v761
    %v766 = vmul.f32 %v705, %v761
    %v767 = vmul.f32 %v706, %v761
    %v768 = vmul.f32 %v707, %v761
    %v769 = vmul.f32 %v708, %v761
    %v770 = vmul.f32 %v711, %v761
    %v771 = vmul.f32 %v712, %v761
    %v772 = vmul.f32 %v713, %v761
    %v773 = vmul.f32 %v714, %v761
    %v774 = vmul.f32 %v715, %v761
    %v775 = vmul.f32 %v716, %v761
    %v776 = vmul.f32 %v717, %v761
    %v777 = vmul.f32 %v718, %v761
    %v778 = vadd.f32 %v741, %v762
    %v779 = vadd.f32 %v742, %v763
    %v780 = vadd.f32 %v743, %v764
    %v781 = vadd.f32 %v744, %v765
    %v782 = vadd.f32 %v745, %v766
    %v783 = vadd.f32 %v746, %v767
    %v784 = vadd.f32 %v747, %v768
    %v785 = vadd.f32 %v748, %v769
    %v786 = vadd.f32 %v749, %v770
    %v787 = vadd.f32 %v750, %v771
    %v788 = vadd.f32 %v751, %v772
    %v789 = vadd.f32 %v752, %v773
    %v790 = vadd.f32 %v753, %v774
    %v791 = vadd.f32 %v754, %v775
    %v792 = vadd.f32 %v755, %v776
    %v793 = vadd.f32 %v756, %v777
    %v794 = vld [vmem:[%s5 + $0x8] sm:$0x1]
    %v795 = vlaneseq
    %v796 = vshrl.u32 %v795, 7
    %v797 = vsub.s32 0, %v796
    %v798 = vrot.slane %v794, %v797
    %v799 = vmul.f32 %v702, %v798
    %v800 = vmul.f32 %v703, %v798
    %v801 = vmul.f32 %v704, %v798
    %v802 = vmul.f32 %v705, %v798
    %v803 = vmul.f32 %v706, %v798
    %v804 = vmul.f32 %v707, %v798
    %v805 = vmul.f32 %v708, %v798
    %v806 = vmul.f32 %v709, %v798
    %v807 = vmul.f32 %v712, %v798
    %v808 = vmul.f32 %v713, %v798
    %v809 = vmul.f32 %v714, %v798
    %v810 = vmul.f32 %v715, %v798
    %v811 = vmul.f32 %v716, %v798
    %v812 = vmul.f32 %v717, %v798
    %v813 = vmul.f32 %v718, %v798
    %v814 = vmul.f32 %v719, %v798
    %v815 = vadd.f32 %v778, %v799
    %v816 = vadd.f32 %v779, %v800
    %v817 = vadd.f32 %v780, %v801
    %v818 = vadd.f32 %v781, %v802
    %v819 = vadd.f32 %v782, %v803
    %v820 = vadd.f32 %v783, %v804
    %v821 = vadd.f32 %v784, %v805
    %v822 = vadd.f32 %v785, %v806
    %v823 = vadd.f32 %v786, %v807
    %v824 = vadd.f32 %v787, %v808
    %v825 = vadd.f32 %v788, %v809
    %v826 = vadd.f32 %v789, %v810
    %v827 = vadd.f32 %v790, %v811
    %v828 = vadd.f32 %v791, %v812
    %v829 = vadd.f32 %v792, %v813
    %v830 = vadd.f32 %v793, %v814
    %831 = vst [vmem:[#allocation3] sm:$0xff] 0.0
    %832 = vst [vmem:[#allocation3 + $0x8] sm:$0xff] 0.0
    %833 = vst [vmem:[#allocation3 + $0x10] sm:$0x1] 0.0
    %834 = vst [vmem:[#allocation3 + $0xf0] sm:$0xff] 0.0
    %835 = vst [vmem:[#allocation3 + $0xf8] sm:$0xff] 0.0
    %836 = vst [vmem:[#allocation3 + $0x100] sm:$0x1] 0.0
    %s837 = scalar_lea.vmem [#allocation3], 216
    %838 = vst [vmem:[%s837] sm:$0xff] 0.0
    %839 = vst [vmem:[%s837 + $0x8] sm:$0xff] 0.0
    %840 = vst [vmem:[%s837 + $0x10] sm:$0x1] 0.0
    %841 = vst [vmem:[%s837 + $0xf0] sm:$0xff] 0.0
    %842 = vst [vmem:[%s837 + $0xf8] sm:$0xff] 0.0
    %843 = vst [vmem:[%s837 + $0x100] sm:$0x1] 0.0
    %844 = vst [vmem:[#allocation3 + $0x7] sm:$0x1] 0.0
    %845 = vst [vmem:[#allocation3 + $0x1f] sm:$0x1] 0.0
    %846 = vst [vmem:[#allocation3 + $0x37] sm:$0x1] 0.0
    %847 = vst [vmem:[#allocation3 + $0x4f] sm:$0x1] 0.0
    %848 = vst [vmem:[#allocation3 + $0x67] sm:$0x1] 0.0
    %849 = vst [vmem:[#allocation3 + $0x7f] sm:$0x1] 0.0
    %850 = vst [vmem:[#allocation3 + $0x97] sm:$0x1] 0.0
    %851 = vst [vmem:[#allocation3 + $0xaf] sm:$0x1] 0.0
    %852 = vst [vmem:[#allocation3 + $0xc7] sm:$0x1] 0.0
    %853 = vst [vmem:[#allocation3 + $0xdf] sm:$0x1] 0.0
    %854 = vst [vmem:[#allocation3 + $0xf7] sm:$0x1] 0.0
    %855 = vst [vmem:[#allocation3 + $0x10f] sm:$0x1] 0.0
    %856 = vst [vmem:[#allocation3 + $0x127] sm:$0x1] 0.0
    %857 = vst [vmem:[#allocation3 + $0x13f] sm:$0x1] 0.0
    %858 = vst [vmem:[#allocation3 + $0x157] sm:$0x1] 0.0
    %859 = vst [vmem:[#allocation3 + $0x16f] sm:$0x1] 0.0
    %860 = vst [vmem:[#allocation3 + $0x187] sm:$0x1] 0.0
    %861 = vst [vmem:[#allocation3 + $0x19f] sm:$0x1] 0.0
    %862 = vst [vmem:[#allocation3 + $0x1b7] sm:$0x1] 0.0
    %863 = vst [vmem:[#allocation3 + $0x1cf] sm:$0x1] 0.0
    %864 = vst [vmem:[#allocation3 + $0x10] sm:$0x1] 0.0
    %865 = vst [vmem:[#allocation3 + $0x28] sm:$0x1] 0.0
    %866 = vst [vmem:[#allocation3 + $0x40] sm:$0x1] 0.0
    %867 = vst [vmem:[#allocation3 + $0x58] sm:$0x1] 0.0
    %868 = vst [vmem:[#allocation3 + $0x70] sm:$0x1] 0.0
    %869 = vst [vmem:[#allocation3 + $0x88] sm:$0x1] 0.0
    %870 = vst [vmem:[#allocation3 + $0xa0] sm:$0x1] 0.0
    %871 = vst [vmem:[#allocation3 + $0xb8] sm:$0x1] 0.0
    %872 = vst [vmem:[#allocation3 + $0xd0] sm:$0x1] 0.0
    %873 = vst [vmem:[#allocation3 + $0xe8] sm:$0x1] 0.0
    %874 = vst [vmem:[#allocation3 + $0x100] sm:$0x1] 0.0
    %875 = vst [vmem:[#allocation3 + $0x118] sm:$0x1] 0.0
    %876 = vst [vmem:[#allocation3 + $0x130] sm:$0x1] 0.0
    %877 = vst [vmem:[#allocation3 + $0x148] sm:$0x1] 0.0
    %878 = vst [vmem:[#allocation3 + $0x160] sm:$0x1] 0.0
    %879 = vst [vmem:[#allocation3 + $0x178] sm:$0x1] 0.0
    %880 = vst [vmem:[#allocation3 + $0x190] sm:$0x1] 0.0
    %881 = vst [vmem:[#allocation3 + $0x1a8] sm:$0x1] 0.0
    %882 = vst [vmem:[#allocation3 + $0x1c0] sm:$0x1] 0.0
    %883 = vst [vmem:[#allocation3 + $0x1d8] sm:$0x1] 0.0
    %s884 = scalar_lea.vmem [#allocation3], 24
    %885 = vst [vmem:[%s884 + $0x8] sm:$0xff] %v299
    %886 = vst [vmem:[%s884 + $0x20] sm:$0xff] %v302
    %887 = vst [vmem:[%s884 + $0x38] sm:$0xff] %v307
    %888 = vst [vmem:[%s884 + $0x50] sm:$0xff] %v310
    %889 = vst [vmem:[%s884 + $0x68] sm:$0xff] %v315
    %890 = vst [vmem:[%s884 + $0x80] sm:$0xff] %v318
    %891 = vst [vmem:[%s884 + $0x98] sm:$0xff] %v323
    %892 = vst [vmem:[%s884 + $0xb0] sm:$0xff] %v326
    %893 = vst [vmem:[%s884 + $0xf8] sm:$0xff] %v331
    %894 = vst [vmem:[%s884 + $0x110] sm:$0xff] %v334
    %895 = vst [vmem:[%s884 + $0x128] sm:$0xff] %v339
    %896 = vst [vmem:[%s884 + $0x140] sm:$0xff] %v342
    %897 = vst [vmem:[%s884 + $0x158] sm:$0xff] %v347
    %898 = vst [vmem:[%s884 + $0x170] sm:$0xff] %v350
    %899 = vst [vmem:[%s884 + $0x188] sm:$0xff] %v355
    %900 = vst [vmem:[%s884 + $0x1a0] sm:$0xff] %v358
    %v901 = vld [vmem:[%s8] sm:$0x1]
    %v903 = vlaneseq
    %v904 = vshrl.u32 %v903, 7
    %v905 = vsub.s32 0, %v904
    %v906 = vrot.slane %v901, %v905
    %v908 = vld [vmem:[#allocation3 + $0x7] sm:$0xff]
    %v909 = vld [vmem:[#allocation3 + $0x1f] sm:$0xff]
    %v910 = vld [vmem:[#allocation3 + $0x37] sm:$0xff]
    %v911 = vld [vmem:[#allocation3 + $0x4f] sm:$0xff]
    %v912 = vld [vmem:[#allocation3 + $0x67] sm:$0xff]
    %v913 = vld [vmem:[#allocation3 + $0x7f] sm:$0xff]
    %v914 = vld [vmem:[#allocation3 + $0x97] sm:$0xff]
    %v915 = vld [vmem:[#allocation3 + $0xaf] sm:$0xff]
    %v916 = vld [vmem:[#allocation3 + $0xc7] sm:$0xff]
    %v917 = vld [vmem:[#allocation3 + $0xdf] sm:$0xff]
    %v918 = vld [vmem:[#allocation3 + $0xf7] sm:$0xff]
    %v919 = vld [vmem:[#allocation3 + $0x10f] sm:$0xff]
    %v920 = vld [vmem:[#allocation3 + $0x127] sm:$0xff]
    %v921 = vld [vmem:[#allocation3 + $0x13f] sm:$0xff]
    %v922 = vld [vmem:[#allocation3 + $0x157] sm:$0xff]
    %v923 = vld [vmem:[#allocation3 + $0x16f] sm:$0xff]
    %v924 = vld [vmem:[#allocation3 + $0x187] sm:$0xff]
    %v925 = vld [vmem:[#allocation3 + $0x19f] sm:$0xff]
    %v926 = vld [vmem:[#allocation3 + $0x1b7] sm:$0xff]
    %v927 = vld [vmem:[#allocation3 + $0x1cf] sm:$0xff]
    %v928 = vld [vmem:[%s6] sm:$0x1]
    %v929 = vlaneseq
    %v930 = vshrl.u32 %v929, 7
    %v931 = vsub.s32 0, %v930
    %v932 = vrot.slane %v928, %v931
    %v933 = vmul.f32 %v908, %v932
    %v934 = vmul.f32 %v909, %v932
    %v935 = vmul.f32 %v910, %v932
    %v936 = vmul.f32 %v911, %v932
    %v937 = vmul.f32 %v912, %v932
    %v938 = vmul.f32 %v913, %v932
    %v939 = vmul.f32 %v914, %v932
    %v940 = vmul.f32 %v915, %v932
    %v941 = vmul.f32 %v918, %v932
    %v942 = vmul.f32 %v919, %v932
    %v943 = vmul.f32 %v920, %v932
    %v944 = vmul.f32 %v921, %v932
    %v945 = vmul.f32 %v922, %v932
    %v946 = vmul.f32 %v923, %v932
    %v947 = vmul.f32 %v924, %v932
    %v948 = vmul.f32 %v925, %v932
    %v949 = vadd.f32 %v906, %v933
    %v950 = vadd.f32 %v906, %v934
    %v951 = vadd.f32 %v906, %v935
    %v952 = vadd.f32 %v906, %v936
    %v953 = vadd.f32 %v906, %v937
    %v954 = vadd.f32 %v906, %v938
    %v955 = vadd.f32 %v906, %v939
    %v956 = vadd.f32 %v906, %v940
    %v957 = vadd.f32 %v906, %v941
    %v958 = vadd.f32 %v906, %v942
    %v959 = vadd.f32 %v906, %v943
    %v960 = vadd.f32 %v906, %v944
    %v961 = vadd.f32 %v906, %v945
    %v962 = vadd.f32 %v906, %v946
    %v963 = vadd.f32 %v906, %v947
    %v964 = vadd.f32 %v906, %v948
    %v965 = vld [vmem:[%s6 + $0x3] sm:$0x1]
    %v966 = vlaneseq
    %v967 = vshrl.u32 %v966, 7
    %v968 = vsub.s32 0, %v967
    %v969 = vrot.slane %v965, %v968
    %v970 = vmul.f32 %v909, %v969
    %v971 = vmul.f32 %v910, %v969
    %v972 = vmul.f32 %v911, %v969
    %v973 = vmul.f32 %v912, %v969
    %v974 = vmul.f32 %v913, %v969
    %v975 = vmul.f32 %v914, %v969
    %v976 = vmul.f32 %v915, %v969
    %v977 = vmul.f32 %v916, %v969
    %v978 = vmul.f32 %v919, %v969
    %v979 = vmul.f32 %v920, %v969
    %v980 = vmul.f32 %v921, %v969
    %v981 = vmul.f32 %v922, %v969
    %v982 = vmul.f32 %v923, %v969
    %v983 = vmul.f32 %v924, %v969
    %v984 = vmul.f32 %v925, %v969
    %v985 = vmul.f32 %v926, %v969
    %v986 = vadd.f32 %v949, %v970
    %v987 = vadd.f32 %v950, %v971
    %v988 = vadd.f32 %v951, %v972
    %v989 = vadd.f32 %v952, %v973
    %v990 = vadd.f32 %v953, %v974
    %v991 = vadd.f32 %v954, %v975
    %v992 = vadd.f32 %v955, %v976
    %v993 = vadd.f32 %v956, %v977
    %v994 = vadd.f32 %v957, %v978
    %v995 = vadd.f32 %v958, %v979
    %v996 = vadd.f32 %v959, %v980
    %v997 = vadd.f32 %v960, %v981
    %v998 = vadd.f32 %v961, %v982
    %v999 = vadd.f32 %v962, %v983
    %v1000 = vadd.f32 %v963, %v984
    %v1001 = vadd.f32 %v964, %v985
    %v1002 = vld [vmem:[%s6 + $0x6] sm:$0x1]
    %v1003 = vlaneseq
    %v1004 = vshrl.u32 %v1003, 7
    %v1005 = vsub.s32 0, %v1004
    %v1006 = vrot.slane %v1002, %v1005
    %v1007 = vmul.f32 %v910, %v1006
    %v1008 = vmul.f32 %v911, %v1006
    %v1009 = vmul.f32 %v912, %v1006
    %v1010 = vmul.f32 %v913, %v1006
    %v1011 = vmul.f32 %v914, %v1006
    %v1012 = vmul.f32 %v915, %v1006
    %v1013 = vmul.f32 %v916, %v1006
    %v1014 = vmul.f32 %v917, %v1006
    %v1015 = vmul.f32 %v920, %v1006
    %v1016 = vmul.f32 %v921, %v1006
    %v1017 = vmul.f32 %v922, %v1006
    %v1018 = vmul.f32 %v923, %v1006
    %v1019 = vmul.f32 %v924, %v1006
    %v1020 = vmul.f32 %v925, %v1006
    %v1021 = vmul.f32 %v926, %v1006
    %v1022 = vmul.f32 %v927, %v1006
    %v1023 = vadd.f32 %v986, %v1007
    %v1024 = vadd.f32 %v987, %v1008
    %v1025 = vadd.f32 %v988, %v1009
    %v1026 = vadd.f32 %v989, %v1010
    %v1027 = vadd.f32 %v990, %v1011
    %v1028 = vadd.f32 %v991, %v1012
    %v1029 = vadd.f32 %v992, %v1013
    %v1030 = vadd.f32 %v993, %v1014
    %v1031 = vadd.f32 %v994, %v1015
    %v1032 = vadd.f32 %v995, %v1016
    %v1033 = vadd.f32 %v996, %v1017
    %v1034 = vadd.f32 %v997, %v1018
    %v1035 = vadd.f32 %v998, %v1019
    %v1036 = vadd.f32 %v999, %v1020
    %v1037 = vadd.f32 %v1000, %v1021
    %v1038 = vadd.f32 %v1001, %v1022
    %v1039 = vld [vmem:[#allocation3 + $0x8] sm:$0xff]
    %v1040 = vld [vmem:[#allocation3 + $0x20] sm:$0xff]
    %v1041 = vld [vmem:[#allocation3 + $0x38] sm:$0xff]
    %v1042 = vld [vmem:[#allocation3 + $0x50] sm:$0xff]
    %v1043 = vld [vmem:[#allocation3 + $0x68] sm:$0xff]
    %v1044 = vld [vmem:[#allocation3 + $0x80] sm:$0xff]
    %v1045 = vld [vmem:[#allocation3 + $0x98] sm:$0xff]
    %v1046 = vld [vmem:[#allocation3 + $0xb0] sm:$0xff]
    %v1047 = vld [vmem:[#allocation3 + $0xc8] sm:$0xff]
    %v1048 = vld [vmem:[#allocation3 + $0xe0] sm:$0xff]
    %v1049 = vld [vmem:[#allocation3 + $0xf8] sm:$0xff]
    %v1050 = vld [vmem:[#allocation3 + $0x110] sm:$0xff]
    %v1051 = vld [vmem:[#allocation3 + $0x128] sm:$0xff]
    %v1052 = vld [vmem:[#allocation3 + $0x140] sm:$0xff]
    %v1053 = vld [vmem:[#allocation3 + $0x158] sm:$0xff]
    %v1054 = vld [vmem:[#allocation3 + $0x170] sm:$0xff]
    %v1055 = vld [vmem:[#allocation3 + $0x188] sm:$0xff]
    %v1056 = vld [vmem:[#allocation3 + $0x1a0] sm:$0xff]
    %v1057 = vld [vmem:[#allocation3 + $0x1b8] sm:$0xff]
    %v1058 = vld [vmem:[#allocation3 + $0x1d0] sm:$0xff]
    %v1059 = vld [vmem:[%s6 + $0x1] sm:$0x1]
    %v1060 = vlaneseq
    %v1061 = vshrl.u32 %v1060, 7
    %v1062 = vsub.s32 0, %v1061
    %v1063 = vrot.slane %v1059, %v1062
    %v1064 = vmul.f32 %v1039, %v1063
    %v1065 = vmul.f32 %v1040, %v1063
    %v1066 = vmul.f32 %v1041, %v1063
    %v1067 = vmul.f32 %v1042, %v1063
    %v1068 = vmul.f32 %v1043, %v1063
    %v1069 = vmul.f32 %v1044, %v1063
    %v1070 = vmul.f32 %v1045, %v1063
    %v1071 = vmul.f32 %v1046, %v1063
    %v1072 = vmul.f32 %v1049, %v1063
    %v1073 = vmul.f32 %v1050, %v1063
    %v1074 = vmul.f32 %v1051, %v1063
    %v1075 = vmul.f32 %v1052, %v1063
    %v1076 = vmul.f32 %v1053, %v1063
    %v1077 = vmul.f32 %v1054, %v1063
    %v1078 = vmul.f32 %v1055, %v1063
    %v1079 = vmul.f32 %v1056, %v1063
    %v1080 = vadd.f32 %v1023, %v1064
    %v1081 = vadd.f32 %v1024, %v1065
    %v1082 = vadd.f32 %v1025, %v1066
    %v1083 = vadd.f32 %v1026, %v1067
    %v1084 = vadd.f32 %v1027, %v1068
    %v1085 = vadd.f32 %v1028, %v1069
    %v1086 = vadd.f32 %v1029, %v1070
    %v1087 = vadd.f32 %v1030, %v1071
    %v1088 = vadd.f32 %v1031, %v1072
    %v1089 = vadd.f32 %v1032, %v1073
    %v1090 = vadd.f32 %v1033, %v1074
    %v1091 = vadd.f32 %v1034, %v1075
    %v1092 = vadd.f32 %v1035, %v1076
    %v1093 = vadd.f32 %v1036, %v1077
    %v1094 = vadd.f32 %v1037, %v1078
    %v1095 = vadd.f32 %v1038, %v1079
    %v1096 = vld [vmem:[%s6 + $0x4] sm:$0x1]
    %v1097 = vlaneseq
    %v1098 = vshrl.u32 %v1097, 7
    %v1099 = vsub.s32 0, %v1098
    %v1100 = vrot.slane %v1096, %v1099
    %v1101 = vmul.f32 %v1040, %v1100
    %v1102 = vmul.f32 %v1041, %v1100
    %v1103 = vmul.f32 %v1042, %v1100
    %v1104 = vmul.f32 %v1043, %v1100
    %v1105 = vmul.f32 %v1044, %v1100
    %v1106 = vmul.f32 %v1045, %v1100
    %v1107 = vmul.f32 %v1046, %v1100
    %v1108 = vmul.f32 %v1047, %v1100
    %v1109 = vmul.f32 %v1050, %v1100
    %v1110 = vmul.f32 %v1051, %v1100
    %v1111 = vmul.f32 %v1052, %v1100
    %v1112 = vmul.f32 %v1053, %v1100
    %v1113 = vmul.f32 %v1054, %v1100
    %v1114 = vmul.f32 %v1055, %v1100
    %v1115 = vmul.f32 %v1056, %v1100
    %v1116 = vmul.f32 %v1057, %v1100
    %v1117 = vadd.f32 %v1080, %v1101
    %v1118 = vadd.f32 %v1081, %v1102
    %v1119 = vadd.f32 %v1082, %v1103
    %v1120 = vadd.f32 %v1083, %v1104
    %v1121 = vadd.f32 %v1084, %v1105
    %v1122 = vadd.f32 %v1085, %v1106
    %v1123 = vadd.f32 %v1086, %v1107
    %v1124 = vadd.f32 %v1087, %v1108
    %v1125 = vadd.f32 %v1088, %v1109
    %v1126 = vadd.f32 %v1089, %v1110
    %v1127 = vadd.f32 %v1090, %v1111
    %v1128 = vadd.f32 %v1091, %v1112
    %v1129 = vadd.f32 %v1092, %v1113
    %v1130 = vadd.f32 %v1093, %v1114
    %v1131 = vadd.f32 %v1094, %v1115
    %v1132 = vadd.f32 %v1095, %v1116
    %v1133 = vld [vmem:[%s6 + $0x7] sm:$0x1]
    %v1134 = vlaneseq
    %v1135 = vshrl.u32 %v1134, 7
    %v1136 = vsub.s32 0, %v1135
    %v1137 = vrot.slane %v1133, %v1136
    %v1138 = vmul.f32 %v1041, %v1137
    %v1139 = vmul.f32 %v1042, %v1137
    %v1140 = vmul.f32 %v1043, %v1137
    %v1141 = vmul.f32 %v1044, %v1137
    %v1142 = vmul.f32 %v1045, %v1137
    %v1143 = vmul.f32 %v1046, %v1137
    %v1144 = vmul.f32 %v1047, %v1137
    %v1145 = vmul.f32 %v1048, %v1137
    %v1146 = vmul.f32 %v1051, %v1137
    %v1147 = vmul.f32 %v1052, %v1137
    %v1148 = vmul.f32 %v1053, %v1137
    %v1149 = vmul.f32 %v1054, %v1137
    %v1150 = vmul.f32 %v1055, %v1137
    %v1151 = vmul.f32 %v1056, %v1137
    %v1152 = vmul.f32 %v1057, %v1137
    %v1153 = vmul.f32 %v1058, %v1137
    %v1154 = vadd.f32 %v1117, %v1138
    %v1155 = vadd.f32 %v1118, %v1139
    %v1156 = vadd.f32 %v1119, %v1140
    %v1157 = vadd.f32 %v1120, %v1141
    %v1158 = vadd.f32 %v1121, %v1142
    %v1159 = vadd.f32 %v1122, %v1143
    %v1160 = vadd.f32 %v1123, %v1144
    %v1161 = vadd.f32 %v1124, %v1145
    %v1162 = vadd.f32 %v1125, %v1146
    %v1163 = vadd.f32 %v1126, %v1147
    %v1164 = vadd.f32 %v1127, %v1148
    %v1165 = vadd.f32 %v1128, %v1149
    %v1166 = vadd.f32 %v1129, %v1150
    %v1167 = vadd.f32 %v1130, %v1151
    %v1168 = vadd.f32 %v1131, %v1152
    %v1169 = vadd.f32 %v1132, %v1153
    %v1170 = vld [vmem:[#allocation3 + $0x9] sm:$0xff]
    %v1171 = vld [vmem:[#allocation3 + $0x21] sm:$0xff]
    %v1172 = vld [vmem:[#allocation3 + $0x39] sm:$0xff]
    %v1173 = vld [vmem:[#allocation3 + $0x51] sm:$0xff]
    %v1174 = vld [vmem:[#allocation3 + $0x69] sm:$0xff]
    %v1175 = vld [vmem:[#allocation3 + $0x81] sm:$0xff]
    %v1176 = vld [vmem:[#allocation3 + $0x99] sm:$0xff]
    %v1177 = vld [vmem:[#allocation3 + $0xb1] sm:$0xff]
    %v1178 = vld [vmem:[#allocation3 + $0xc9] sm:$0xff]
    %v1179 = vld [vmem:[#allocation3 + $0xe1] sm:$0xff]
    %v1180 = vld [vmem:[#allocation3 + $0xf9] sm:$0xff]
    %v1181 = vld [vmem:[#allocation3 + $0x111] sm:$0xff]
    %v1182 = vld [vmem:[#allocation3 + $0x129] sm:$0xff]
    %v1183 = vld [vmem:[#allocation3 + $0x141] sm:$0xff]
    %v1184 = vld [vmem:[#allocation3 + $0x159] sm:$0xff]
    %v1185 = vld [vmem:[#allocation3 + $0x171] sm:$0xff]
    %v1186 = vld [vmem:[#allocation3 + $0x189] sm:$0xff]
    %v1187 = vld [vmem:[#allocation3 + $0x1a1] sm:$0xff]
    %v1188 = vld [vmem:[#allocation3 + $0x1b9] sm:$0xff]
    %v1189 = vld [vmem:[#allocation3 + $0x1d1] sm:$0xff]
    %v1190 = vld [vmem:[%s6 + $0x2] sm:$0x1]
    %v1191 = vlaneseq
    %v1192 = vshrl.u32 %v1191, 7
    %v1193 = vsub.s32 0, %v1192
    %v1194 = vrot.slane %v1190, %v1193
    %v1195 = vmul.f32 %v1170, %v1194
    %v1196 = vmul.f32 %v1171, %v1194
    %v1197 = vmul.f32 %v1172, %v1194
    %v1198 = vmul.f32 %v1173, %v1194
    %v1199 = vmul.f32 %v1174, %v1194
    %v1200 = vmul.f32 %v1175, %v1194
    %v1201 = vmul.f32 %v1176, %v1194
    %v1202 = vmul.f32 %v1177, %v1194
    %v1203 = vmul.f32 %v1180, %v1194
    %v1204 = vmul.f32 %v1181, %v1194
    %v1205 = vmul.f32 %v1182, %v1194
    %v1206 = vmul.f32 %v1183, %v1194
    %v1207 = vmul.f32 %v1184, %v1194
    %v1208 = vmul.f32 %v1185, %v1194
    %v1209 = vmul.f32 %v1186, %v1194
    %v1210 = vmul.f32 %v1187, %v1194
    %v1211 = vadd.f32 %v1154, %v1195
    %v1212 = vadd.f32 %v1155, %v1196
    %v1213 = vadd.f32 %v1156, %v1197
    %v1214 = vadd.f32 %v1157, %v1198
    %v1215 = vadd.f32 %v1158, %v1199
    %v1216 = vadd.f32 %v1159, %v1200
    %v1217 = vadd.f32 %v1160, %v1201
    %v1218 = vadd.f32 %v1161, %v1202
    %v1219 = vadd.f32 %v1162, %v1203
    %v1220 = vadd.f32 %v1163, %v1204
    %v1221 = vadd.f32 %v1164, %v1205
    %v1222 = vadd.f32 %v1165, %v1206
    %v1223 = vadd.f32 %v1166, %v1207
    %v1224 = vadd.f32 %v1167, %v1208
    %v1225 = vadd.f32 %v1168, %v1209
    %v1226 = vadd.f32 %v1169, %v1210
    %v1227 = vld [vmem:[%s6 + $0x5] sm:$0x1]
    %v1228 = vlaneseq
    %v1229 = vshrl.u32 %v1228, 7
    %v1230 = vsub.s32 0, %v1229
    %v1231 = vrot.slane %v1227, %v1230
    %v1232 = vmul.f32 %v1171, %v1231
    %v1233 = vmul.f32 %v1172, %v1231
    %v1234 = vmul.f32 %v1173, %v1231
    %v1235 = vmul.f32 %v1174, %v1231
    %v1236 = vmul.f32 %v1175, %v1231
    %v1237 = vmul.f32 %v1176, %v1231
    %v1238 = vmul.f32 %v1177, %v1231
    %v1239 = vmul.f32 %v1178, %v1231
    %v1240 = vmul.f32 %v1181, %v1231
    %v1241 = vmul.f32 %v1182, %v1231
    %v1242 = vmul.f32 %v1183, %v1231
    %v1243 = vmul.f32 %v1184, %v1231
    %v1244 = vmul.f32 %v1185, %v1231
    %v1245 = vmul.f32 %v1186, %v1231
    %v1246 = vmul.f32 %v1187, %v1231
    %v1247 = vmul.f32 %v1188, %v1231
    %v1248 = vadd.f32 %v1211, %v1232
    %v1249 = vadd.f32 %v1212, %v1233
    %v1250 = vadd.f32 %v1213, %v1234
    %v1251 = vadd.f32 %v1214, %v1235
    %v1252 = vadd.f32 %v1215, %v1236
    %v1253 = vadd.f32 %v1216, %v1237
    %v1254 = vadd.f32 %v1217, %v1238
    %v1255 = vadd.f32 %v1218, %v1239
    %v1256 = vadd.f32 %v1219, %v1240
    %v1257 = vadd.f32 %v1220, %v1241
    %v1258 = vadd.f32 %v1221, %v1242
    %v1259 = vadd.f32 %v1222, %v1243
    %v1260 = vadd.f32 %v1223, %v1244
    %v1261 = vadd.f32 %v1224, %v1245
    %v1262 = vadd.f32 %v1225, %v1246
    %v1263 = vadd.f32 %v1226, %v1247
    %v1264 = vld [vmem:[%s6 + $0x8] sm:$0x1]
    %v1265 = vlaneseq
    %v1266 = vshrl.u32 %v1265, 7
    %v1267 = vsub.s32 0, %v1266
    %v1268 = vrot.slane %v1264, %v1267
    %v1269 = vmul.f32 %v1172, %v1268
    %v1270 = vmul.f32 %v1173, %v1268
    %v1271 = vmul.f32 %v1174, %v1268
    %v1272 = vmul.f32 %v1175, %v1268
    %v1273 = vmul.f32 %v1176, %v1268
    %v1274 = vmul.f32 %v1177, %v1268
    %v1275 = vmul.f32 %v1178, %v1268
    %v1276 = vmul.f32 %v1179, %v1268
    %v1277 = vmul.f32 %v1182, %v1268
    %v1278 = vmul.f32 %v1183, %v1268
    %v1279 = vmul.f32 %v1184, %v1268
    %v1280 = vmul.f32 %v1185, %v1268
    %v1281 = vmul.f32 %v1186, %v1268
    %v1282 = vmul.f32 %v1187, %v1268
    %v1283 = vmul.f32 %v1188, %v1268
    %v1284 = vmul.f32 %v1189, %v1268
    %v1285 = vadd.f32 %v1248, %v1269
    %v1286 = vadd.f32 %v1249, %v1270
    %v1287 = vadd.f32 %v1250, %v1271
    %v1288 = vadd.f32 %v1251, %v1272
    %v1289 = vadd.f32 %v1252, %v1273
    %v1290 = vadd.f32 %v1253, %v1274
    %v1291 = vadd.f32 %v1254, %v1275
    %v1292 = vadd.f32 %v1255, %v1276
    %v1293 = vadd.f32 %v1256, %v1277
    %v1294 = vadd.f32 %v1257, %v1278
    %v1295 = vadd.f32 %v1258, %v1279
    %v1296 = vadd.f32 %v1259, %v1280
    %v1297 = vadd.f32 %v1260, %v1281
    %v1298 = vadd.f32 %v1261, %v1282
    %v1299 = vadd.f32 %v1262, %v1283
    %v1300 = vadd.f32 %v1263, %v1284
    %v1301 = vmul.f32 %v815, 0.5
    %v1302 = vmul.f32 %v816, 0.5
    %v1303 = vmul.f32 %v817, 0.5
    %v1304 = vmul.f32 %v818, 0.5
    %v1305 = vmul.f32 %v819, 0.5
    %v1306 = vmul.f32 %v820, 0.5
    %v1307 = vmul.f32 %v821, 0.5
    %v1308 = vmul.f32 %v822, 0.5
    %v1309 = vmul.f32 %v823, 0.5
    %v1310 = vmul.f32 %v824, 0.5
    %v1311 = vmul.f32 %v825, 0.5
    %v1312 = vmul.f32 %v826, 0.5
    %v1313 = vmul.f32 %v827, 0.5
    %v1314 = vmul.f32 %v828, 0.5
    %v1315 = vmul.f32 %v829, 0.5
    %v1316 = vmul.f32 %v830, 0.5
    %v1317 = vmul.f32 %v815, 0.70710677
    %v1318 = vmul.f32 %v816, 0.70710677
    %v1319 = vmul.f32 %v817, 0.70710677
    %v1320 = vmul.f32 %v818, 0.70710677
    %v1321 = vmul.f32 %v819, 0.70710677
    %v1322 = vmul.f32 %v820, 0.70710677
    %v1323 = vmul.f32 %v821, 0.70710677
    %v1324 = vmul.f32 %v822, 0.70710677
    %v1325 = vmul.f32 %v823, 0.70710677
    %v1326 = vmul.f32 %v824, 0.70710677
    %v1327 = vmul.f32 %v825, 0.70710677
    %v1328 = vmul.f32 %v826, 0.70710677
    %v1329 = vmul.f32 %v827, 0.70710677
    %v1330 = vmul.f32 %v828, 0.70710677
    %v1331 = vmul.f32 %v829, 0.70710677
    %v1332 = vmul.f32 %v830, 0.70710677
    %v1333 = verf.f32.pop %v1317
    %v1334 = verf.f32.pop %v1318
    %v1335 = verf.f32.pop %v1319
    %v1336 = verf.f32.pop %v1320
    %v1337 = verf.f32.pop %v1321
    %v1338 = verf.f32.pop %v1322
    %v1339 = verf.f32.pop %v1323
    %v1340 = verf.f32.pop %v1324
    %v1341 = verf.f32.pop %v1325
    %v1342 = verf.f32.pop %v1326
    %v1343 = verf.f32.pop %v1327
    %v1344 = verf.f32.pop %v1328
    %v1345 = verf.f32.pop %v1329
    %v1346 = verf.f32.pop %v1330
    %v1347 = verf.f32.pop %v1331
    %v1348 = verf.f32.pop %v1332
    %v1349 = vadd.f32 %v1333, 1.0
    %v1350 = vadd.f32 %v1334, 1.0
    %v1351 = vadd.f32 %v1335, 1.0
    %v1352 = vadd.f32 %v1336, 1.0
    %v1353 = vadd.f32 %v1337, 1.0
    %v1354 = vadd.f32 %v1338, 1.0
    %v1355 = vadd.f32 %v1339, 1.0
    %v1356 = vadd.f32 %v1340, 1.0
    %v1357 = vadd.f32 %v1341, 1.0
    %v1358 = vadd.f32 %v1342, 1.0
    %v1359 = vadd.f32 %v1343, 1.0
    %v1360 = vadd.f32 %v1344, 1.0
    %v1361 = vadd.f32 %v1345, 1.0
    %v1362 = vadd.f32 %v1346, 1.0
    %v1363 = vadd.f32 %v1347, 1.0
    %v1364 = vadd.f32 %v1348, 1.0
    %v1365 = vmul.f32 %v1301, %v1349
    %v1366 = vmul.f32 %v1302, %v1350
    %v1367 = vmul.f32 %v1303, %v1351
    %v1368 = vmul.f32 %v1304, %v1352
    %v1369 = vmul.f32 %v1305, %v1353
    %v1370 = vmul.f32 %v1306, %v1354
    %v1371 = vmul.f32 %v1307, %v1355
    %v1372 = vmul.f32 %v1308, %v1356
    %v1373 = vmul.f32 %v1309, %v1357
    %v1374 = vmul.f32 %v1310, %v1358
    %v1375 = vmul.f32 %v1311, %v1359
    %v1376 = vmul.f32 %v1312, %v1360
    %v1377 = vmul.f32 %v1313, %v1361
    %v1378 = vmul.f32 %v1314, %v1362
    %v1379 = vmul.f32 %v1315, %v1363
    %v1380 = vmul.f32 %v1316, %v1364
    %v1381 = vmul.f32 %v1365, %v1285
    %v1382 = vmul.f32 %v1366, %v1286
    %v1383 = vmul.f32 %v1367, %v1287
    %v1384 = vmul.f32 %v1368, %v1288
    %v1385 = vmul.f32 %v1369, %v1289
    %v1386 = vmul.f32 %v1370, %v1290
    %v1387 = vmul.f32 %v1371, %v1291
    %v1388 = vmul.f32 %v1372, %v1292
    %v1389 = vmul.f32 %v1373, %v1293
    %v1390 = vmul.f32 %v1374, %v1294
    %v1391 = vmul.f32 %v1375, %v1295
    %v1392 = vmul.f32 %v1376, %v1296
    %v1393 = vmul.f32 %v1377, %v1297
    %v1394 = vmul.f32 %v1378, %v1298
    %v1395 = vmul.f32 %v1379, %v1299
    %v1396 = vmul.f32 %v1380, %v1300
    %v1397 = vpack.c.bf16 %v1382, %v1381
    %v1398 = vpack.c.bf16 %v1384, %v1383
    %v1399 = vpack.c.bf16 %v1386, %v1385
    %v1400 = vpack.c.bf16 %v1388, %v1387
    %v1401 = vpack.c.bf16 %v1390, %v1389
    %v1402 = vpack.c.bf16 %v1392, %v1391
    %v1403 = vpack.c.bf16 %v1394, %v1393
    %v1404 = vpack.c.bf16 %v1396, %v1395
    %v1405 = vld [vmem:[%s9] sm:$0xf]
    %v1406 = vld [vmem:[%s9 + $0x4] sm:$0xf]
    %v1407 = vld [vmem:[%s9 + $0x8] sm:$0xf]
    %v1408 = vld [vmem:[%s9 + $0xc] sm:$0xf]
    %v1409 = vld [vmem:[%s9 + $0x10] sm:$0xf]
    %v1410 = vld [vmem:[%s9 + $0x14] sm:$0xf]
    %v1411 = vld [vmem:[%s9 + $0x18] sm:$0xf]
    %v1412 = vld [vmem:[%s9 + $0x1c] sm:$0xf]
    %v1413 = vld [vmem:[%s9 + $0x20] sm:$0xf]
    %v1414 = vld [vmem:[%s9 + $0x24] sm:$0xf]
    %v1415 = vld [vmem:[%s9 + $0x28] sm:$0xf]
    %v1416 = vld [vmem:[%s9 + $0x2c] sm:$0xf]
    %v1417 = vld [vmem:[%s9 + $0x30] sm:$0xf]
    %v1418 = vld [vmem:[%s9 + $0x34] sm:$0xf]
    %v1419 = vld [vmem:[%s9 + $0x38] sm:$0xf]
    %v1420 = vld [vmem:[%s9 + $0x3c] sm:$0xf]
    %v1421 = vld [vmem:[%s10] sm:$0x1]
    %v1423 = vlaneseq
    %v1424 = vshrl.u32 %v1423, 7
    %v1425 = vsub.s32 0, %v1424
    %v1426 = vrot.slane %v1421, %v1425
    %v1444 = vunpack.c.l.b16 %v1405
    %v1445 = vunpack.c.l.b16 %v1406
    %v1446 = vunpack.c.l.b16 %v1407
    %v1447 = vunpack.c.l.b16 %v1408
    %v1448 = vunpack.c.l.b16 %v1409
    %v1449 = vunpack.c.l.b16 %v1410
    %v1450 = vunpack.c.l.b16 %v1411
    %v1451 = vunpack.c.l.b16 %v1412
    %v1452 = vunpack.c.l.b16 %v1413
    %v1453 = vunpack.c.l.b16 %v1414
    %v1454 = vunpack.c.l.b16 %v1415
    %v1455 = vunpack.c.l.b16 %v1416
    %v1456 = vunpack.c.l.b16 %v1417
    %v1457 = vunpack.c.l.b16 %v1418
    %v1458 = vunpack.c.l.b16 %v1419
    %v1459 = vunpack.c.l.b16 %v1420
    %v1460 = vpack.c.b16 %v1445, %v1444
    %v1461 = vpack.c.b16 %v1447, %v1446
    %v1462 = vpack.c.b16 %v1449, %v1448
    %v1463 = vpack.c.b16 %v1451, %v1450
    %v1464 = vpack.c.b16 %v1453, %v1452
    %v1465 = vpack.c.b16 %v1455, %v1454
    %v1466 = vpack.c.b16 %v1457, %v1456
    %v1467 = vpack.c.b16 %v1459, %v1458
    %1476 = vmatprep.subr.bf16.mxu0 0
    %1477 = vmatpush1.bf16.msra.mxu0 %v1467
    %1478 = vmatprep.subr.bf16.mxu0 0
    %1479 = vmatpush1.bf16.msra.mxu0 %v1466
    %1480 = vmatprep.subr.bf16.mxu0 0
    %1481 = vmatpush1.bf16.msra.mxu0 %v1465
    %1482 = vmatprep.subr.bf16.mxu0 0
    %1483 = vmatpush1.bf16.msra.mxu0 %v1464
    %1484 = vmatprep.subr.bf16.mxu0 0
    %1485 = vmatpush1.bf16.msra.mxu0 %v1463
    %1486 = vmatprep.subr.bf16.mxu0 0
    %1487 = vmatpush1.bf16.msra.mxu0 %v1462
    %1488 = vmatprep.subr.bf16.mxu0 0
    %1489 = vmatpush1.bf16.msra.mxu0 %v1461
    %1490 = vmatprep.subr.bf16.mxu0 0
    %1491 = vmatpush1.bf16.msra.mxu0 %v1460
    %1492 = vmatprep.subr.bf16.mxu0 0
    %1493 = vmatpush2.bf16.msra.mxu0 0
    %1494 = vmatprep.subr.bf16.mxu0 0
    %1495 = vmatpush2.bf16.msra.mxu0 0
    %1496 = vmatprep.subr.bf16.mxu0 0
    %1497 = vmatpush2.bf16.msra.mxu0 0
    %1498 = vmatprep.subr.bf16.mxu0 0
    %1499 = vmatpush2.bf16.msra.mxu0 0
    %1500 = vmatprep.subr.bf16.mxu0 0
    %1501 = vmatpush2.bf16.msra.mxu0 0
    %1502 = vmatprep.subr.bf16.mxu0 0
    %1503 = vmatpush2.bf16.msra.mxu0 0
    %1504 = vmatprep.subr.bf16.mxu0 0
    %1505 = vmatpush2.bf16.msra.mxu0 0
    %1506 = vmatprep.subr.bf16.mxu0 0
    %1507 = vmatpush2.bf16.msra.mxu0 0
    %1508 = vmatprep.mubr.bf16.mxu0 0
    %1509 = vmatmul.mubr.bf16.gmra.mxu0 %v1397
    %v1510 = vpop.f32.mrf.mxu0
    %v1511 = vadd.f32 %v1426, %v1510
    %v1512 = vpop.f32.mrf.mxu0
    %v1513 = vpop.f32.mrf.mxu0
    %v1514 = vadd.f32 %v1426, %v1513
    %v1515 = vpop.f32.mrf.mxu0
    %1516 = vmatprep.mubr.bf16.mxu0 0
    %1517 = vmatmul.mubr.bf16.gmra.mxu0 %v1398
    %v1518 = vpop.f32.mrf.mxu0
    %v1519 = vadd.f32 %v1426, %v1518
    %v1520 = vpop.f32.mrf.mxu0
    %v1521 = vpop.f32.mrf.mxu0
    %v1522 = vadd.f32 %v1426, %v1521
    %v1523 = vpop.f32.mrf.mxu0
    %1524 = vmatprep.mubr.bf16.mxu0 0
    %1525 = vmatmul.mubr.bf16.gmra.mxu0 %v1399
    %v1526 = vpop.f32.mrf.mxu0
    %v1527 = vadd.f32 %v1426, %v1526
    %v1528 = vpop.f32.mrf.mxu0
    %v1529 = vpop.f32.mrf.mxu0
    %v1530 = vadd.f32 %v1426, %v1529
    %v1531 = vpop.f32.mrf.mxu0
    %1532 = vmatprep.mubr.bf16.mxu0 0
    %1533 = vmatmul.mubr.bf16.gmra.mxu0 %v1400
    %v1534 = vpop.f32.mrf.mxu0
    %v1535 = vadd.f32 %v1426, %v1534
    %v1536 = vpop.f32.mrf.mxu0
    %v1537 = vpop.f32.mrf.mxu0
    %v1538 = vadd.f32 %v1426, %v1537
    %v1539 = vpop.f32.mrf.mxu0
    %1540 = vmatprep.mubr.bf16.mxu0 0
    %1541 = vmatmul.mubr.bf16.gmra.mxu0 %v1401
    %v1542 = vpop.f32.mrf.mxu0
    %v1543 = vadd.f32 %v1426, %v1542
    %v1544 = vpop.f32.mrf.mxu0
    %v1545 = vpop.f32.mrf.mxu0
    %v1546 = vadd.f32 %v1426, %v1545
    %v1547 = vpop.f32.mrf.mxu0
    %1548 = vmatprep.mubr.bf16.mxu0 0
    %1549 = vmatmul.mubr.bf16.gmra.mxu0 %v1402
    %v1550 = vpop.f32.mrf.mxu0
    %v1551 = vadd.f32 %v1426, %v1550
    %v1552 = vpop.f32.mrf.mxu0
    %v1553 = vpop.f32.mrf.mxu0
    %v1554 = vadd.f32 %v1426, %v1553
    %v1555 = vpop.f32.mrf.mxu0
    %1556 = vmatprep.mubr.bf16.mxu0 0
    %1557 = vmatmul.mubr.bf16.gmra.mxu0 %v1403
    %v1558 = vpop.f32.mrf.mxu0
    %v1559 = vadd.f32 %v1426, %v1558
    %v1560 = vpop.f32.mrf.mxu0
    %v1561 = vpop.f32.mrf.mxu0
    %v1562 = vadd.f32 %v1426, %v1561
    %v1563 = vpop.f32.mrf.mxu0
    %1564 = vmatprep.mubr.bf16.mxu0 0
    %1565 = vmatmul.mubr.bf16.gmra.mxu0 %v1404
    %v1566 = vpop.f32.mrf.mxu0
    %v1567 = vadd.f32 %v1426, %v1566
    %v1568 = vpop.f32.mrf.mxu0
    %v1569 = vpop.f32.mrf.mxu0
    %v1570 = vadd.f32 %v1426, %v1569
    %v1571 = vpop.f32.mrf.mxu0
    %1572 = vdwg.mxu0
    %1573 = vst.msk [vmem:[#allocation4] sm:$0xff] %vm103, %v1511
    %1574 = vst.msk [vmem:[#allocation4 + $0x8] sm:$0xff] %vm103, %v1514
    %1575 = vst.msk [vmem:[#allocation4 + $0x10] sm:$0xff] %vm103, %v1519
    %1576 = vst.msk [vmem:[#allocation4 + $0x18] sm:$0xff] %vm103, %v1522
    %1577 = vst.msk [vmem:[#allocation4 + $0x20] sm:$0xff] %vm103, %v1527
    %1578 = vst.msk [vmem:[#allocation4 + $0x28] sm:$0xff] %vm103, %v1530
    %1579 = vst.msk [vmem:[#allocation4 + $0x30] sm:$0xff] %vm103, %v1535
    %1580 = vst.msk [vmem:[#allocation4 + $0x38] sm:$0xff] %vm103, %v1538
    %1581 = vst.msk [vmem:[#allocation4 + $0x40] sm:$0xff] %vm103, %v1543
    %1582 = vst.msk [vmem:[#allocation4 + $0x48] sm:$0xff] %vm103, %v1546
    %1583 = vst.msk [vmem:[#allocation4 + $0x50] sm:$0xff] %vm103, %v1551
    %1584 = vst.msk [vmem:[#allocation4 + $0x58] sm:$0xff] %vm103, %v1554
    %1585 = vst.msk [vmem:[#allocation4 + $0x60] sm:$0xff] %vm103, %v1559
    %1586 = vst.msk [vmem:[#allocation4 + $0x68] sm:$0xff] %vm103, %v1562
    %1587 = vst.msk [vmem:[#allocation4 + $0x70] sm:$0xff] %vm103, %v1567
    %1588 = vst.msk [vmem:[#allocation4 + $0x78] sm:$0xff] %vm103, %v1570
    // Predicated region
    $region46: #{feedforward_pallas.1} parent=1 // pred_check
      _
    $region47: #{feedforward_pallas.1} parent=1 // pred_check_branch
      %1590 = sbr.rel (0) target = $region49
    $region48: #{feedforward_pallas.1} parent=1 // pred_region
      %s1592 = ssub.s32 2048, 2048
      %1593 = vsyncadd [#allocation5], %s1592
      %s1594 = sshll.u32 [#allocation4], 4
      %s1595 = int_to_ptr.vmem [resolvable:$true] %s1594
      %1600 = dma.vmem_to_hbm [thread:$0]  %s1595, 2048, %s11, [#allocation5], 128, 128, 8
    $region49: #{feedforward_pallas.1} parent=1 // pred_fallthru
      _
    // Predicated region
    $region50: #{feedforward_pallas.1} parent=1 // pred_check
      _
    $region51: #{feedforward_pallas.1} parent=1 // pred_check_branch
      %1602 = sbr.rel (0) target = $region53
    $region52: #{feedforward_pallas.1} parent=1 // pred_region
      %1603 = dma.done [#allocation5], 2048
    $region53: #{feedforward_pallas.1} parent=1 // pred_fallthru
      _
    %1604 = vsyncpa [#allocation5], 1

</llo_original>
